<compile_context>
chip_gen: v7x
topology: tpu7x:2x2x1
jax: 0.10.0
libtpu: 0.0.40
codegen_flags: <defaults>
</compile_context>

<pallas_src>
import jax
import jax.numpy as jnp
from jax import lax
from jax.experimental import pallas as pl
from jax.experimental.pallas import tpu as pltpu


def bpr_kernel(u_idx_ref, i_idx_ref, j_idx_ref,   # (1, TB) int32 index tiles (VMEM)
               user_t_ref, item_t_ref,            # (D, n_user) / (D, n_item) f32, VMEM-resident
               pui_ref, puj_ref):                 # (1, TB) f32 lane-dense outputs
    _, n_user = user_t_ref.shape
    _, n_item = item_t_ref.shape
    tb = u_idx_ref.shape[-1]

    def gather_t(table_ref, idx_row, n_rows):
        # One-hot^T gather on the MXU: onehot[n, b] = (idx[b] == n)
        row_ids = lax.broadcasted_iota(jnp.int32, (n_rows, tb), 0)
        onehot = (row_ids == idx_row).astype(jnp.float32)          # (n_rows, TB)
        # (D, n_rows) @ (n_rows, TB) -> (D, TB); exact for one-hot operands.
        return jnp.dot(table_ref[...], onehot,
                       preferred_element_type=jnp.float32,
                       precision=lax.Precision.HIGHEST)

    u_e = gather_t(user_t_ref, u_idx_ref[...], n_user)   # (D, TB)
    i_e = gather_t(item_t_ref, i_idx_ref[...], n_item)   # (D, TB)
    j_e = gather_t(item_t_ref, j_idx_ref[...], n_item)   # (D, TB)

    # p_ui[b] = sum_d u_e[d, b] * i_e[d, b]  -> (1, TB), lane-dense store.
    pui_ref[...] = jnp.sum(u_e * i_e, axis=0, keepdims=True)
    puj_ref[...] = jnp.sum(u_e * j_e, axis=0, keepdims=True)


def bpr_forward(embed_user, embed_item, u, i, j, *, tile_b=None):
    """Equivalent of BPR.forward(u, i, j) -> (p_ui, p_uj), each (batch, 1)."""
    B = u.shape[0]
    n_user, D = embed_user.shape
    n_item = embed_item.shape[0]

    if tile_b is None:
        # Lane-dense tile: multiple of 128, capped to keep the one-hot small.
        tile_b = min(512, ((B + 127) // 128) * 128)
    b_pad = ((B + tile_b - 1) // tile_b) * tile_b
    num_tiles = b_pad // tile_b

    def prep_idx(idx):
        flat = idx.reshape(-1).astype(jnp.int32)
        flat = jnp.pad(flat, (0, b_pad - B))          # pad with row 0 (valid index)
        return flat.reshape(num_tiles, tile_b)

    u_idx, i_idx, j_idx = prep_idx(u), prep_idx(i), prep_idx(j)

    # (D, N) layout so the batch sits on the lane axis inside the kernel.
    user_t = embed_user.T.astype(jnp.float32)
    item_t = embed_item.T.astype(jnp.float32)

    grid_spec = pltpu.PrefetchScalarGridSpec(
        num_scalar_prefetch=0,
        grid=(num_tiles,),
        in_specs=[
            pl.BlockSpec((1, tile_b), lambda t: (t, 0)),     # u indices tile
            pl.BlockSpec((1, tile_b), lambda t: (t, 0)),     # i indices tile
            pl.BlockSpec((1, tile_b), lambda t: (t, 0)),     # j indices tile
            pl.BlockSpec((D, n_user), lambda t: (0, 0)),     # user table (resident)
            pl.BlockSpec((D, n_item), lambda t: (0, 0)),     # item table (resident, passed once)
        ],
        out_specs=[
            pl.BlockSpec((1, tile_b), lambda t: (t, 0)),
            pl.BlockSpec((1, tile_b), lambda t: (t, 0)),
        ],
    )

    out_shape = (
        jax.ShapeDtypeStruct((num_tiles, tile_b), jnp.float32),
        jax.ShapeDtypeStruct((num_tiles, tile_b), jnp.float32),
    )

    p_ui, p_uj = pl.pallas_call(
        bpr_kernel,
        grid_spec=grid_spec,
        out_shape=out_shape,
        compiler_params=pltpu.CompilerParams(
            dimension_semantics=("parallel",)),
    )(u_idx, i_idx, j_idx, user_t, item_t)

    p_ui = p_ui.reshape(b_pad)[:B].reshape(B, 1)
    p_uj = p_uj.reshape(b_pad)[:B].reshape(B, 1)
    return p_ui, p_uj


def xavier_normal(key, shape):
    # torch.nn.init.xavier_normal_ on an (n, d) Embedding weight:
    # fan_in = d, fan_out = n, std = sqrt(2 / (fan_in + fan_out))
    n, d = shape
    std = (2.0 / (n + d)) ** 0.5
    return std * jax.random.normal(key, shape, dtype=jnp.float32)


if __name__ == "__main__":
    # Small, deterministic synthetic setup (no checkpoint loading).
    n_user, n_item, embed_dim = 64, 128, 32
    batch = 8

    key = jax.random.PRNGKey(0)
    k_user, k_item, k_u, k_i, k_j = jax.random.split(key, 5)

    embed_user = xavier_normal(k_user, (n_user, embed_dim))
    embed_item = xavier_normal(k_item, (n_item, embed_dim))

    # (batch, 1) index tensors, as in the PyTorch forward signature.
    u = jax.random.randint(k_u, (batch, 1), 0, n_user, dtype=jnp.int32)
    i = jax.random.randint(k_i, (batch, 1), 0, n_item, dtype=jnp.int32)
    j = jax.random.randint(k_j, (batch, 1), 0, n_item, dtype=jnp.int32)

    p_ui, p_uj = bpr_forward(embed_user, embed_item, u, i, j)
    jax.block_until_ready((p_ui, p_uj))

    # Pure-JAX reference for verification.
    u_e = embed_user[u.reshape(-1)]
    i_e = embed_item[i.reshape(-1)]
    j_e = embed_item[j.reshape(-1)]
    ref_ui = jnp.sum(u_e * i_e, axis=-1, keepdims=True)
    ref_uj = jnp.sum(u_e * j_e, axis=-1, keepdims=True)

    assert p_ui.shape == (batch, 1) and p_uj.shape == (batch, 1)
    assert jnp.allclose(p_ui, ref_ui, atol=1e-5, rtol=1e-4)
    assert jnp.allclose(p_uj, ref_uj, atol=1e-5, rtol=1e-4)

    print("KERNEL_OK")
</pallas_src>

<mosaic_0001>
module attributes {stable_mosaic.version = 11 : i64} {
  func.func @bpr_kernel(%arg0: i32, %arg1: memref<1x128xi32, #tpu.memory_space<vmem>>, %arg2: memref<1x128xi32, #tpu.memory_space<vmem>>, %arg3: memref<1x128xi32, #tpu.memory_space<vmem>>, %arg4: memref<32x64xf32, #tpu.memory_space<vmem>>, %arg5: memref<32x128xf32, #tpu.memory_space<vmem>>, %arg6: memref<1x128xf32, #tpu.memory_space<vmem>>, %arg7: memref<1x128xf32, #tpu.memory_space<vmem>>) attributes {dimension_semantics = [#tpu.dimension_semantics<parallel>], iteration_bounds = array<i64: 1>, scalar_prefetch = 0 : i64, scratch_operands = 0 : i64, tpu.core_type = #tpu.core_type<tc>, window_params = [{transform_indices = @transform_0, window_bounds = array<i64: 1, 128>}, {transform_indices = @transform_1, window_bounds = array<i64: 1, 128>}, {transform_indices = @transform_2, window_bounds = array<i64: 1, 128>}, {pipeline_mode = #tpu.pipeline_mode<synchronous>, transform_indices = @transform_3, window_bounds = array<i64: 32, 64>}, {pipeline_mode = #tpu.pipeline_mode<synchronous>, transform_indices = @transform_4, window_bounds = array<i64: 32, 128>}, {transform_indices = @transform_5, window_bounds = array<i64: 1, 128>}, {transform_indices = @transform_6, window_bounds = array<i64: 1, 128>}]} {
    %c0 = arith.constant 0 : index
    %c0_0 = arith.constant 0 : index
    %0 = vector.load %arg1[%c0, %c0_0] : memref<1x128xi32, #tpu.memory_space<vmem>>, vector<1x128xi32>
    %1 = tpu.iota {dimensions = array<i32: 0>} : vector<64x128xi32>
    %2 = vector.broadcast %0 : vector<1x128xi32> to vector<64x128xi32>
    %3 = arith.cmpi eq, %1, %2 : vector<64x128xi32>
    %4 = arith.extui %3 : vector<64x128xi1> to vector<64x128xi32>
    %5 = arith.sitofp %4 : vector<64x128xi32> to vector<64x128xf32>
    %c0_1 = arith.constant 0 : index
    %c0_2 = arith.constant 0 : index
    %6 = vector.load %arg4[%c0_1, %c0_2] : memref<32x64xf32, #tpu.memory_space<vmem>>, vector<32x64xf32>
    %cst = arith.constant dense<0.000000e+00> : vector<32x128xf32>
    %7 = tpu.matmul %6, %5, %cst {dimension_numbers = #tpu.dot_dimension_numbers<[1], [0], [0], [1], [0, 0, 1, 1], [], []>, precision = #tpu.contract_precision<fp32>} : vector<32x64xf32>, vector<64x128xf32>, vector<32x128xf32> -> vector<32x128xf32>
    %c0_3 = arith.constant 0 : index
    %c0_4 = arith.constant 0 : index
    %8 = vector.load %arg2[%c0_3, %c0_4] : memref<1x128xi32, #tpu.memory_space<vmem>>, vector<1x128xi32>
    %9 = tpu.iota {dimensions = array<i32: 0>} : vector<128x128xi32>
    %10 = vector.broadcast %8 : vector<1x128xi32> to vector<128x128xi32>
    %11 = arith.cmpi eq, %9, %10 : vector<128x128xi32>
    %12 = arith.extui %11 : vector<128x128xi1> to vector<128x128xi32>
    %13 = arith.sitofp %12 : vector<128x128xi32> to vector<128x128xf32>
    %c0_5 = arith.constant 0 : index
    %c0_6 = arith.constant 0 : index
    %14 = vector.load %arg5[%c0_5, %c0_6] : memref<32x128xf32, #tpu.memory_space<vmem>>, vector<32x128xf32>
    %cst_7 = arith.constant dense<0.000000e+00> : vector<32x128xf32>
    %15 = tpu.matmul %14, %13, %cst_7 {dimension_numbers = #tpu.dot_dimension_numbers<[1], [0], [0], [1], [0, 0, 1, 1], [], []>, precision = #tpu.contract_precision<fp32>} : vector<32x128xf32>, vector<128x128xf32>, vector<32x128xf32> -> vector<32x128xf32>
    %c0_8 = arith.constant 0 : index
    %c0_9 = arith.constant 0 : index
    %16 = vector.load %arg3[%c0_8, %c0_9] : memref<1x128xi32, #tpu.memory_space<vmem>>, vector<1x128xi32>
    %17 = tpu.iota {dimensions = array<i32: 0>} : vector<128x128xi32>
    %18 = vector.broadcast %16 : vector<1x128xi32> to vector<128x128xi32>
    %19 = arith.cmpi eq, %17, %18 : vector<128x128xi32>
    %20 = arith.extui %19 : vector<128x128xi1> to vector<128x128xi32>
    %21 = arith.sitofp %20 : vector<128x128xi32> to vector<128x128xf32>
    %c0_10 = arith.constant 0 : index
    %c0_11 = arith.constant 0 : index
    %22 = vector.load %arg5[%c0_10, %c0_11] : memref<32x128xf32, #tpu.memory_space<vmem>>, vector<32x128xf32>
    %cst_12 = arith.constant dense<0.000000e+00> : vector<32x128xf32>
    %23 = tpu.matmul %22, %21, %cst_12 {dimension_numbers = #tpu.dot_dimension_numbers<[1], [0], [0], [1], [0, 0, 1, 1], [], []>, precision = #tpu.contract_precision<fp32>} : vector<32x128xf32>, vector<128x128xf32>, vector<32x128xf32> -> vector<32x128xf32>
    %24 = arith.mulf %7, %15 : vector<32x128xf32>
    %cst_13 = arith.constant dense<0.000000e+00> : vector<128xf32>
    %25 = vector.multi_reduction <add>, %24, %cst_13 [0] : vector<32x128xf32> to vector<128xf32>
    %26 = vector.shape_cast %25 : vector<128xf32> to vector<1x128xf32>
    %c0_14 = arith.constant 0 : index
    %c0_15 = arith.constant 0 : index
    %27 = vector.load %arg6[%c0_14, %c0_15] : memref<1x128xf32, #tpu.memory_space<vmem>>, vector<1x128xf32>
    tpu.vector_store %arg6[%c0_14, %c0_15], %26 {strides = array<i32>} : memref<1x128xf32, #tpu.memory_space<vmem>>, vector<1x128xf32>,
    %28 = arith.mulf %7, %23 : vector<32x128xf32>
    %cst_16 = arith.constant dense<0.000000e+00> : vector<128xf32>
    %29 = vector.multi_reduction <add>, %28, %cst_16 [0] : vector<32x128xf32> to vector<128xf32>
    %30 = vector.shape_cast %29 : vector<128xf32> to vector<1x128xf32>
    %c0_17 = arith.constant 0 : index
    %c0_18 = arith.constant 0 : index
    %31 = vector.load %arg7[%c0_17, %c0_18] : memref<1x128xf32, #tpu.memory_space<vmem>>, vector<1x128xf32>
    tpu.vector_store %arg7[%c0_17, %c0_18], %30 {strides = array<i32>} : memref<1x128xf32, #tpu.memory_space<vmem>>, vector<1x128xf32>,
    return
  }
  func.func @transform_0(%arg0: i32) -> (i32, i32) {
    %c0_i32 = arith.constant 0 : i32
    %c0_i32_0 = arith.constant 0 : i32
    return %arg0, %c0_i32 : i32, i32
  }
  func.func @transform_1(%arg0: i32) -> (i32, i32) {
    %c0_i32 = arith.constant 0 : i32
    %c0_i32_0 = arith.constant 0 : i32
    return %arg0, %c0_i32 : i32, i32
  }
  func.func @transform_2(%arg0: i32) -> (i32, i32) {
    %c0_i32 = arith.constant 0 : i32
    %c0_i32_0 = arith.constant 0 : i32
    return %arg0, %c0_i32 : i32, i32
  }
  func.func @transform_3(%arg0: i32) -> (i32, i32) {
    %c0_i32 = arith.constant 0 : i32
    %c0_i32_0 = arith.constant 0 : i32
    %c0_i32_1 = arith.constant 0 : i32
    return %c0_i32, %c0_i32_0 : i32, i32
  }
  func.func @transform_4(%arg0: i32) -> (i32, i32) {
    %c0_i32 = arith.constant 0 : i32
    %c0_i32_0 = arith.constant 0 : i32
    %c0_i32_1 = arith.constant 0 : i32
    return %c0_i32, %c0_i32_0 : i32, i32
  }
  func.func @transform_5(%arg0: i32) -> (i32, i32) {
    %c0_i32 = arith.constant 0 : i32
    %c0_i32_0 = arith.constant 0 : i32
    return %arg0, %c0_i32 : i32, i32
  }
  func.func @transform_6(%arg0: i32) -> (i32, i32) {
    %c0_i32 = arith.constant 0 : i32
    %c0_i32_0 = arith.constant 0 : i32
    return %arg0, %c0_i32 : i32, i32
  }
}

</mosaic_0001>

<llo_original>
// kernel: tpu_custom_call.1
$region0: #{tpu_custom_call.1}
  #allocation0 [shape = 'u32[]', space=smem, size = 0x4, offset = 0x4, fixed_abs, tag = 'smem constant byte address 0x4 - core index']
  #allocation1 [shape = 'u32[144,128]{1,0:T(1,128)}', space=vmem, size = 0x12000, scoped, tag = 'internal scratch']
  %s0 = inlined_call_operand.hbm [shape: s32[1,128], index: 0, kind: input, shape index: {}]
  %s1 = inlined_call_operand.vmem [shape: s32[1,128], index: 1, kind: input, shape index: {}]
  %s2 = inlined_call_operand.vmem [shape: s32[1,128], index: 2, kind: input, shape index: {}]
  %s3 = inlined_call_operand.hbm [shape: f32[32,64], index: 3, kind: input, shape index: {}]
  %s4 = inlined_call_operand.hbm [shape: f32[32,128], index: 4, kind: input, shape index: {}]
  %s5 = inlined_call_operand.hbm [shape: f32[1,128], index: 5, kind: output, shape index: {0}]
  %s6 = inlined_call_operand.hbm [shape: f32[1,128], index: 6, kind: output, shape index: {1}]
  %7 = xla_tuple %s5, %s6
  %s8 = sld [smem:[#allocation0]]
  $region50: #{tpu_custom_call.1} parent=0
    _
  %s10 = ssub.s32 1, %s8
  %s11 = scalar_select 0, %s10, %s8
  $region1: #{tpu_custom_call.1} parent=0
    #allocation2 [shape = 'u8[512]{0}', space=vmem, size = 0x400, scoped, tag = 'input window, operand 0, single buffered']
    #allocation3 [shape = 's32[1]{0}', space=sflag, size = 0x4, scoped, tag = 'scoped memory for tpu_custom_call.1']
    #allocation4 [shape = 's32[1]{0}', space=sflag, size = 0x4, scoped, tag = 'scoped memory for tpu_custom_call.1']
    #allocation5 [shape = 'u8[16384]{0}', space=vmem, size = 0x4000, scoped, tag = 'input window, operand 3, single buffered']
    #allocation6 [shape = 's32[1]{0}', space=sflag, size = 0x4, scoped, tag = 'scoped memory for tpu_custom_call.1']
    #allocation7 [shape = 'u8[16384]{0}', space=vmem, size = 0x4000, scoped, tag = 'input window, operand 4, single buffered']
    #allocation8 [shape = 'u8[512]{0}', space=vmem, size = 0x400, scoped, tag = 'output window, operand 0, single buffered']
    #allocation9 [shape = 'u8[512]{0}', space=vmem, size = 0x400, scoped, tag = 'output window, operand 1, single buffered']
    #allocation10 [shape = 's32[1]{0}', space=sflag, size = 0x4, scoped, tag = 'scoped memory for tpu_custom_call.1']
    %12 = vsyncpa [#allocation3], 0
    %13 = vsyncpa [#allocation6], 0
    %14 = vsyncpa [#allocation4], 0
    %15 = vsyncpa [#allocation10], 0
    // Predicated region
    $region2: #{tpu_custom_call.1} parent=1 // pred_check
      _
    $region3: #{tpu_custom_call.1} parent=1 // pred_check_branch
      %17 = sbr.rel (0) target = $region5
    $region4: #{tpu_custom_call.1} parent=1 // pred_region
      %s19 = ssub.s32 16, 16
      %20 = vsyncadd [#allocation3], %s19
      %s22 = sshll.u32 [#allocation2], 4
      %s23 = int_to_ptr.vmem [resolvable:$true] %s22
      %25 = dma.hbm_to_vmem [thread:$0]  %s0, 16, %s23, [#allocation3]
    $region5: #{tpu_custom_call.1} parent=1 // pred_fallthru
      _
    // Predicated region
    $region6: #{tpu_custom_call.1} parent=1 // pred_check
      _
    $region7: #{tpu_custom_call.1} parent=1 // pred_check_branch
      %27 = sbr.rel (0) target = $region9
    $region8: #{tpu_custom_call.1} parent=1 // pred_region
      _
    $region9: #{tpu_custom_call.1} parent=1 // pred_fallthru
      _
    // Predicated region
    $region10: #{tpu_custom_call.1} parent=1 // pred_check
      _
    $region11: #{tpu_custom_call.1} parent=1 // pred_check_branch
      %29 = sbr.rel (0) target = $region13
    $region12: #{tpu_custom_call.1} parent=1 // pred_region
      _
    $region13: #{tpu_custom_call.1} parent=1 // pred_fallthru
      _
    // Predicated region
    $region14: #{tpu_custom_call.1} parent=1 // pred_check
      _
    $region15: #{tpu_custom_call.1} parent=1 // pred_check_branch
      %31 = sbr.rel (0) target = $region17
    $region16: #{tpu_custom_call.1} parent=1 // pred_region
      %s33 = ssub.s32 512, 512
      %34 = vsyncadd [#allocation6], %s33
      %s35 = sshll.u32 [#allocation5], 4
      %s36 = int_to_ptr.vmem [resolvable:$true] %s35
      %41 = dma.hbm_to_vmem [thread:$0]  %s3, 512, %s36, [#allocation6], 128, 128, 8
    $region17: #{tpu_custom_call.1} parent=1 // pred_fallthru
      _
    // Predicated region
    $region18: #{tpu_custom_call.1} parent=1 // pred_check
      _
    $region19: #{tpu_custom_call.1} parent=1 // pred_check_branch
      %43 = sbr.rel (0) target = $region21
    $region20: #{tpu_custom_call.1} parent=1 // pred_region
      %s45 = ssub.s32 512, 512
      %46 = vsyncadd [#allocation6], %s45
      %s47 = sshll.u32 [#allocation7], 4
      %s48 = int_to_ptr.vmem [resolvable:$true] %s47
      %53 = dma.hbm_to_vmem [thread:$0]  %s4, 512, %s48, [#allocation6], 128, 128, 8
    $region21: #{tpu_custom_call.1} parent=1 // pred_fallthru
      _
    // Predicated region
    $region22: #{tpu_custom_call.1} parent=1 // pred_check
      _
    $region23: #{tpu_custom_call.1} parent=1 // pred_check_branch
      %55 = sbr.rel (0) target = $region25
    $region24: #{tpu_custom_call.1} parent=1 // pred_region
      %56 = dma.done [#allocation3], 16
    $region25: #{tpu_custom_call.1} parent=1 // pred_fallthru
      _
    // Predicated region
    $region26: #{tpu_custom_call.1} parent=1 // pred_check
      _
    $region27: #{tpu_custom_call.1} parent=1 // pred_check_branch
      %58 = sbr.rel (0) target = $region29
    $region28: #{tpu_custom_call.1} parent=1 // pred_region
      %59 = dma.done [#allocation6], 512
    $region29: #{tpu_custom_call.1} parent=1 // pred_fallthru
      _
    // Predicated region
    $region30: #{tpu_custom_call.1} parent=1 // pred_check
      _
    $region31: #{tpu_custom_call.1} parent=1 // pred_check_branch
      %61 = sbr.rel (0) target = $region33
    $region32: #{tpu_custom_call.1} parent=1 // pred_region
      %62 = dma.done [#allocation6], 512
    $region33: #{tpu_custom_call.1} parent=1 // pred_fallthru
      _
    %v63 = vld [vmem:[#allocation2] sm:$0x1]
    %v64 = vlaneseq
    %v65 = vshrl.u32 %v64, 7
    %v66 = vadd.s32 %v65, 8
    %v67 = vadd.s32 %v65, 16
    %v68 = vadd.s32 %v65, 24
    %v69 = vadd.s32 %v65, 32
    %v70 = vadd.s32 %v65, 40
    %v71 = vadd.s32 %v65, 48
    %v72 = vadd.s32 %v65, 56
    %v73 = vlaneseq
    %v74 = vshrl.u32 %v73, 7
    %v75 = vsub.s32 0, %v74
    %v76 = vrot.slane %v63, %v75
    %vm77 = vcmp.eq.s32.totalorder %v65, %v76
    %vm78 = vcmp.eq.s32.totalorder %v66, %v76
    %vm79 = vcmp.eq.s32.totalorder %v67, %v76
    %vm80 = vcmp.eq.s32.totalorder %v68, %v76
    %vm81 = vcmp.eq.s32.totalorder %v69, %v76
    %vm82 = vcmp.eq.s32.totalorder %v70, %v76
    %vm83 = vcmp.eq.s32.totalorder %v71, %v76
    %vm84 = vcmp.eq.s32.totalorder %v72, %v76
    %v85 = vsel %vm77, 1, 0
    %v86 = vsel %vm78, 1, 0
    %v87 = vsel %vm79, 1, 0
    %v88 = vsel %vm80, 1, 0
    %v89 = vsel %vm81, 1, 0
    %v90 = vsel %vm82, 1, 0
    %v91 = vsel %vm83, 1, 0
    %v92 = vsel %vm84, 1, 0
    %v93 = vcvt.s32.f32 %v85
    %v94 = vcvt.s32.f32 %v86
    %v95 = vcvt.s32.f32 %v87
    %v96 = vcvt.s32.f32 %v88
    %v97 = vcvt.s32.f32 %v89
    %v98 = vcvt.s32.f32 %v90
    %v99 = vcvt.s32.f32 %v91
    %v100 = vcvt.s32.f32 %v92
    %v101 = vld [vmem:[#allocation5] sm:$0xff]
    %v102 = vld [vmem:[#allocation5 + $0x8] sm:$0xff]
    %v103 = vld [vmem:[#allocation5 + $0x10] sm:$0xff]
    %v104 = vld [vmem:[#allocation5 + $0x18] sm:$0xff]
    %vm105 = vcmask 523264
    %v107 = vsel %vm105, %v101, 0
    %v110 = vsel %vm105, %v102, 0
    %v113 = vsel %vm105, %v103, 0
    %v116 = vsel %vm105, %v104, 0
    %118 = vmatprep.subr.mxu0 0.0
    %v119 = vand.u32 %v93, 4294901760
    %120 = vmatpush1.msra.mxu0 %v119
    %121 = vmatprep.subr.mxu0 0.0
    %v122 = vand.u32 %v94, 4294901760
    %123 = vmatpush1.msra.mxu0 %v122
    %124 = vmatprep.subr.mxu0 0.0
    %v125 = vand.u32 %v95, 4294901760
    %126 = vmatpush1.msra.mxu0 %v125
    %127 = vmatprep.subr.mxu0 0.0
    %v128 = vand.u32 %v96, 4294901760
    %129 = vmatpush1.msra.mxu0 %v128
    %130 = vmatprep.subr.mxu0 0.0
    %v131 = vand.u32 %v97, 4294901760
    %132 = vmatpush1.msra.mxu0 %v131
    %133 = vmatprep.subr.mxu0 0.0
    %v134 = vand.u32 %v98, 4294901760
    %135 = vmatpush1.msra.mxu0 %v134
    %136 = vmatprep.subr.mxu0 0.0
    %v137 = vand.u32 %v99, 4294901760
    %138 = vmatpush1.msra.mxu0 %v137
    %139 = vmatprep.subr.mxu0 0.0
    %v140 = vand.u32 %v100, 4294901760
    %141 = vmatpush1.msra.mxu0 %v140
    %142 = vmatprep.subr.mxu0 0.0
    %143 = vmatpush1.msra.mxu0 0.0
    %144 = vmatprep.subr.mxu0 0.0
    %145 = vmatpush1.msra.mxu0 0.0
    %146 = vmatprep.subr.mxu0 0.0
    %147 = vmatpush1.msra.mxu0 0.0
    %148 = vmatprep.subr.mxu0 0.0
    %149 = vmatpush1.msra.mxu0 0.0
    %150 = vmatprep.subr.mxu0 0.0
    %151 = vmatpush1.msra.mxu0 0.0
    %152 = vmatprep.subr.mxu0 0.0
    %153 = vmatpush1.msra.mxu0 0.0
    %154 = vmatprep.subr.mxu0 0.0
    %155 = vmatpush1.msra.mxu0 0.0
    %156 = vmatprep.subr.mxu0 0.0
    %157 = vmatpush1.msra.mxu0 0.0
    %158 = vmatprep.subr.mxu0 0.0
    %159 = vmatpush1.msra.mxu0 0.0
    %160 = vmatprep.subr.mxu0 0.0
    %161 = vmatpush1.msra.mxu0 0.0
    %162 = vmatprep.subr.mxu0 0.0
    %163 = vmatpush1.msra.mxu0 0.0
    %164 = vmatprep.subr.mxu0 0.0
    %165 = vmatpush1.msra.mxu0 0.0
    %166 = vmatprep.subr.mxu0 0.0
    %167 = vmatpush1.msra.mxu0 0.0
    %168 = vmatprep.subr.mxu0 0.0
    %169 = vmatpush1.msra.mxu0 0.0
    %170 = vmatprep.subr.mxu0 0.0
    %171 = vmatpush1.msra.mxu0 0.0
    %172 = vmatprep.subr.mxu0 0.0
    %173 = vmatpush1.msra.mxu0 0.0
    %174 = vmatprep.subr.mxu0 0.0
    %175 = vmatpush1.msra.mxu0 0.0
    %176 = vmatprep.subr.mxu0 0.0
    %177 = vmatpush1.msra.mxu0 0.0
    %178 = vmatprep.subr.mxu0 0.0
    %179 = vmatpush1.msra.mxu0 0.0
    %180 = vmatprep.subr.mxu0 0.0
    %181 = vmatpush1.msra.mxu0 0.0
    %182 = vmatprep.subr.mxu0 0.0
    %183 = vmatpush1.msra.mxu0 0.0
    %184 = vmatprep.subr.mxu0 0.0
    %185 = vmatpush1.msra.mxu0 0.0
    %186 = vmatprep.subr.mxu0 0.0
    %187 = vmatpush1.msra.mxu0 0.0
    %188 = vmatprep.subr.mxu0 0.0
    %189 = vmatpush1.msra.mxu0 0.0
    %190 = vmatprep.mubr.f32.mxu0 0.0
    %v191 = vand.u32 %v107, 4294901760
    %v192 = vsub.f32 %v107, %v191
    %v193 = vand.u32 %v192, 4294901760
    %v194 = vsub.f32 %v192, %v193
    %v195 = vand.u32 %v194, 4294901760
    %196 = vmatmul.mubr.f32.gmra.mrb[0].mxu0 %v195
    %v197 = vpop.f32.mrb[0].mxu0
    %v198 = vadd.f32 0.0, %v197
    %v199 = vpop.f32.mrb[0].mxu0
    %200 = vmatprep.mubr.f32.mxu0 0.0
    %v201 = vand.u32 %v110, 4294901760
    %v202 = vsub.f32 %v110, %v201
    %v203 = vand.u32 %v202, 4294901760
    %v204 = vsub.f32 %v202, %v203
    %v205 = vand.u32 %v204, 4294901760
    %206 = vmatmul.mubr.f32.gmra.mrb[0].mxu0 %v205
    %v207 = vpop.f32.mrb[0].mxu0
    %v208 = vadd.f32 0.0, %v207
    %v209 = vpop.f32.mrb[0].mxu0
    %210 = vmatprep.mubr.f32.mxu0 0.0
    %v211 = vand.u32 %v113, 4294901760
    %v212 = vsub.f32 %v113, %v211
    %v213 = vand.u32 %v212, 4294901760
    %v214 = vsub.f32 %v212, %v213
    %v215 = vand.u32 %v214, 4294901760
    %216 = vmatmul.mubr.f32.gmra.mrb[0].mxu0 %v215
    %v217 = vpop.f32.mrb[0].mxu0
    %v218 = vadd.f32 0.0, %v217
    %v219 = vpop.f32.mrb[0].mxu0
    %220 = vmatprep.mubr.f32.mxu0 0.0
    %v221 = vand.u32 %v116, 4294901760
    %v222 = vsub.f32 %v116, %v221
    %v223 = vand.u32 %v222, 4294901760
    %v224 = vsub.f32 %v222, %v223
    %v225 = vand.u32 %v224, 4294901760
    %226 = vmatmul.mubr.f32.gmra.mrb[0].mxu0 %v225
    %v227 = vpop.f32.mrb[0].mxu0
    %v228 = vadd.f32 0.0, %v227
    %v229 = vpop.f32.mrb[0].mxu0
    %230 = vdwg.mxu0
    %231 = vmatprep.subr.mxu0 0.0
    %v232 = vand.u32 %v93, 4294901760
    %v233 = vsub.f32 %v93, %v232
    %v234 = vand.u32 %v233, 4294901760
    %v235 = vsub.f32 %v233, %v234
    %v236 = vand.u32 %v235, 4294901760
    %237 = vmatpush1.msra.mxu0 %v236
    %238 = vmatprep.subr.mxu0 0.0
    %v239 = vand.u32 %v94, 4294901760
    %v240 = vsub.f32 %v94, %v239
    %v241 = vand.u32 %v240, 4294901760
    %v242 = vsub.f32 %v240, %v241
    %v243 = vand.u32 %v242, 4294901760
    %244 = vmatpush1.msra.mxu0 %v243
    %245 = vmatprep.subr.mxu0 0.0
    %v246 = vand.u32 %v95, 4294901760
    %v247 = vsub.f32 %v95, %v246
    %v248 = vand.u32 %v247, 4294901760
    %v249 = vsub.f32 %v247, %v248
    %v250 = vand.u32 %v249, 4294901760
    %251 = vmatpush1.msra.mxu0 %v250
    %252 = vmatprep.subr.mxu0 0.0
    %v253 = vand.u32 %v96, 4294901760
    %v254 = vsub.f32 %v96, %v253
    %v255 = vand.u32 %v254, 4294901760
    %v256 = vsub.f32 %v254, %v255
    %v257 = vand.u32 %v256, 4294901760
    %258 = vmatpush1.msra.mxu0 %v257
    %259 = vmatprep.subr.mxu0 0.0
    %v260 = vand.u32 %v97, 4294901760
    %v261 = vsub.f32 %v97, %v260
    %v262 = vand.u32 %v261, 4294901760
    %v263 = vsub.f32 %v261, %v262
    %v264 = vand.u32 %v263, 4294901760
    %265 = vmatpush1.msra.mxu0 %v264
    %266 = vmatprep.subr.mxu0 0.0
    %v267 = vand.u32 %v98, 4294901760
    %v268 = vsub.f32 %v98, %v267
    %v269 = vand.u32 %v268, 4294901760
    %v270 = vsub.f32 %v268, %v269
    %v271 = vand.u32 %v270, 4294901760
    %272 = vmatpush1.msra.mxu0 %v271
    %273 = vmatprep.subr.mxu0 0.0
    %v274 = vand.u32 %v99, 4294901760
    %v275 = vsub.f32 %v99, %v274
    %v276 = vand.u32 %v275, 4294901760
    %v277 = vsub.f32 %v275, %v276
    %v278 = vand.u32 %v277, 4294901760
    %279 = vmatpush1.msra.mxu0 %v278
    %280 = vmatprep.subr.mxu0 0.0
    %v281 = vand.u32 %v100, 4294901760
    %v282 = vsub.f32 %v100, %v281
    %v283 = vand.u32 %v282, 4294901760
    %v284 = vsub.f32 %v282, %v283
    %v285 = vand.u32 %v284, 4294901760
    %286 = vmatpush1.msra.mxu0 %v285
    %287 = vmatprep.subr.mxu0 0.0
    %288 = vmatpush1.msra.mxu0 0.0
    %289 = vmatprep.subr.mxu0 0.0
    %290 = vmatpush1.msra.mxu0 0.0
    %291 = vmatprep.subr.mxu0 0.0
    %292 = vmatpush1.msra.mxu0 0.0
    %293 = vmatprep.subr.mxu0 0.0
    %294 = vmatpush1.msra.mxu0 0.0
    %295 = vmatprep.subr.mxu0 0.0
    %296 = vmatpush1.msra.mxu0 0.0
    %297 = vmatprep.subr.mxu0 0.0
    %298 = vmatpush1.msra.mxu0 0.0
    %299 = vmatprep.subr.mxu0 0.0
    %300 = vmatpush1.msra.mxu0 0.0
    %301 = vmatprep.subr.mxu0 0.0
    %302 = vmatpush1.msra.mxu0 0.0
    %303 = vmatprep.subr.mxu0 0.0
    %304 = vmatpush1.msra.mxu0 0.0
    %305 = vmatprep.subr.mxu0 0.0
    %306 = vmatpush1.msra.mxu0 0.0
    %307 = vmatprep.subr.mxu0 0.0
    %308 = vmatpush1.msra.mxu0 0.0
    %309 = vmatprep.subr.mxu0 0.0
    %310 = vmatpush1.msra.mxu0 0.0
    %311 = vmatprep.subr.mxu0 0.0
    %312 = vmatpush1.msra.mxu0 0.0
    %313 = vmatprep.subr.mxu0 0.0
    %314 = vmatpush1.msra.mxu0 0.0
    %315 = vmatprep.subr.mxu0 0.0
    %316 = vmatpush1.msra.mxu0 0.0
    %317 = vmatprep.subr.mxu0 0.0
    %318 = vmatpush1.msra.mxu0 0.0
    %319 = vmatprep.subr.mxu0 0.0
    %320 = vmatpush1.msra.mxu0 0.0
    %321 = vmatprep.subr.mxu0 0.0
    %322 = vmatpush1.msra.mxu0 0.0
    %323 = vmatprep.subr.mxu0 0.0
    %324 = vmatpush1.msra.mxu0 0.0
    %325 = vmatprep.subr.mxu0 0.0
    %326 = vmatpush1.msra.mxu0 0.0
    %327 = vmatprep.subr.mxu0 0.0
    %328 = vmatpush1.msra.mxu0 0.0
    %329 = vmatprep.subr.mxu0 0.0
    %330 = vmatpush1.msra.mxu0 0.0
    %331 = vmatprep.subr.mxu0 0.0
    %332 = vmatpush1.msra.mxu0 0.0
    %333 = vmatprep.subr.mxu0 0.0
    %334 = vmatpush1.msra.mxu0 0.0
    %335 = vmatprep.mubr.f32.mxu0 0.0
    %v336 = vand.u32 %v107, 4294901760
    %337 = vmatmul.mubr.f32.gmra.mrb[0].mxu0 %v336
    %v338 = vpop.f32.mrb[0].mxu0
    %v339 = vadd.f32 %v198, %v338
    %v340 = vpop.f32.mrb[0].mxu0
    %341 = vmatprep.mubr.f32.mxu0 0.0
    %v342 = vand.u32 %v110, 4294901760
    %343 = vmatmul.mubr.f32.gmra.mrb[0].mxu0 %v342
    %v344 = vpop.f32.mrb[0].mxu0
    %v345 = vadd.f32 %v208, %v344
    %v346 = vpop.f32.mrb[0].mxu0
    %347 = vmatprep.mubr.f32.mxu0 0.0
    %v348 = vand.u32 %v113, 4294901760
    %349 = vmatmul.mubr.f32.gmra.mrb[0].mxu0 %v348
    %v350 = vpop.f32.mrb[0].mxu0
    %v351 = vadd.f32 %v218, %v350
    %v352 = vpop.f32.mrb[0].mxu0
    %353 = vmatprep.mubr.f32.mxu0 0.0
    %v354 = vand.u32 %v116, 4294901760
    %355 = vmatmul.mubr.f32.gmra.mrb[0].mxu0 %v354
    %v356 = vpop.f32.mrb[0].mxu0
    %v357 = vadd.f32 %v228, %v356
    %v358 = vpop.f32.mrb[0].mxu0
    %359 = vdwg.mxu0
    %360 = vmatprep.subr.mxu0 0.0
    %v361 = vand.u32 %v93, 4294901760
    %v362 = vsub.f32 %v93, %v361
    %363 = vmatpush1.msra.mxu0 %v362
    %364 = vmatprep.subr.mxu0 0.0
    %v365 = vand.u32 %v94, 4294901760
    %v366 = vsub.f32 %v94, %v365
    %367 = vmatpush1.msra.mxu0 %v366
    %368 = vmatprep.subr.mxu0 0.0
    %v369 = vand.u32 %v95, 4294901760
    %v370 = vsub.f32 %v95, %v369
    %371 = vmatpush1.msra.mxu0 %v370
    %372 = vmatprep.subr.mxu0 0.0
    %v373 = vand.u32 %v96, 4294901760
    %v374 = vsub.f32 %v96, %v373
    %375 = vmatpush1.msra.mxu0 %v374
    %376 = vmatprep.subr.mxu0 0.0
    %v377 = vand.u32 %v97, 4294901760
    %v378 = vsub.f32 %v97, %v377
    %379 = vmatpush1.msra.mxu0 %v378
    %380 = vmatprep.subr.mxu0 0.0
    %v381 = vand.u32 %v98, 4294901760
    %v382 = vsub.f32 %v98, %v381
    %383 = vmatpush1.msra.mxu0 %v382
    %384 = vmatprep.subr.mxu0 0.0
    %v385 = vand.u32 %v99, 4294901760
    %v386 = vsub.f32 %v99, %v385
    %387 = vmatpush1.msra.mxu0 %v386
    %388 = vmatprep.subr.mxu0 0.0
    %v389 = vand.u32 %v100, 4294901760
    %v390 = vsub.f32 %v100, %v389
    %391 = vmatpush1.msra.mxu0 %v390
    %392 = vmatprep.subr.mxu0 0.0
    %393 = vmatpush1.msra.mxu0 0.0
    %394 = vmatprep.subr.mxu0 0.0
    %395 = vmatpush1.msra.mxu0 0.0
    %396 = vmatprep.subr.mxu0 0.0
    %397 = vmatpush1.msra.mxu0 0.0
    %398 = vmatprep.subr.mxu0 0.0
    %399 = vmatpush1.msra.mxu0 0.0
    %400 = vmatprep.subr.mxu0 0.0
    %401 = vmatpush1.msra.mxu0 0.0
    %402 = vmatprep.subr.mxu0 0.0
    %403 = vmatpush1.msra.mxu0 0.0
    %404 = vmatprep.subr.mxu0 0.0
    %405 = vmatpush1.msra.mxu0 0.0
    %406 = vmatprep.subr.mxu0 0.0
    %407 = vmatpush1.msra.mxu0 0.0
    %408 = vmatprep.subr.mxu0 0.0
    %409 = vmatpush1.msra.mxu0 0.0
    %410 = vmatprep.subr.mxu0 0.0
    %411 = vmatpush1.msra.mxu0 0.0
    %412 = vmatprep.subr.mxu0 0.0
    %413 = vmatpush1.msra.mxu0 0.0
    %414 = vmatprep.subr.mxu0 0.0
    %415 = vmatpush1.msra.mxu0 0.0
    %416 = vmatprep.subr.mxu0 0.0
    %417 = vmatpush1.msra.mxu0 0.0
    %418 = vmatprep.subr.mxu0 0.0
    %419 = vmatpush1.msra.mxu0 0.0
    %420 = vmatprep.subr.mxu0 0.0
    %421 = vmatpush1.msra.mxu0 0.0
    %422 = vmatprep.subr.mxu0 0.0
    %423 = vmatpush1.msra.mxu0 0.0
    %424 = vmatprep.subr.mxu0 0.0
    %425 = vmatpush1.msra.mxu0 0.0
    %426 = vmatprep.subr.mxu0 0.0
    %427 = vmatpush1.msra.mxu0 0.0
    %428 = vmatprep.subr.mxu0 0.0
    %429 = vmatpush1.msra.mxu0 0.0
    %430 = vmatprep.subr.mxu0 0.0
    %431 = vmatpush1.msra.mxu0 0.0
    %432 = vmatprep.subr.mxu0 0.0
    %433 = vmatpush1.msra.mxu0 0.0
    %434 = vmatprep.subr.mxu0 0.0
    %435 = vmatpush1.msra.mxu0 0.0
    %436 = vmatprep.subr.mxu0 0.0
    %437 = vmatpush1.msra.mxu0 0.0
    %438 = vmatprep.subr.mxu0 0.0
    %439 = vmatpush1.msra.mxu0 0.0
    %440 = vmatprep.mubr.f32.mxu0 0.0
    %v441 = vand.u32 %v107, 4294901760
    %v442 = vsub.f32 %v107, %v441
    %443 = vmatmul.mubr.f32.gmra.mrb[0].mxu0 %v442
    %v444 = vpop.f32.mrb[0].mxu0
    %v445 = vadd.f32 %v339, %v444
    %v446 = vpop.f32.mrb[0].mxu0
    %447 = vmatprep.mubr.f32.mxu0 0.0
    %v448 = vand.u32 %v110, 4294901760
    %v449 = vsub.f32 %v110, %v448
    %450 = vmatmul.mubr.f32.gmra.mrb[0].mxu0 %v449
    %v451 = vpop.f32.mrb[0].mxu0
    %v452 = vadd.f32 %v345, %v451
    %v453 = vpop.f32.mrb[0].mxu0
    %454 = vmatprep.mubr.f32.mxu0 0.0
    %v455 = vand.u32 %v113, 4294901760
    %v456 = vsub.f32 %v113, %v455
    %457 = vmatmul.mubr.f32.gmra.mrb[0].mxu0 %v456
    %v458 = vpop.f32.mrb[0].mxu0
    %v459 = vadd.f32 %v351, %v458
    %v460 = vpop.f32.mrb[0].mxu0
    %461 = vmatprep.mubr.f32.mxu0 0.0
    %v462 = vand.u32 %v116, 4294901760
    %v463 = vsub.f32 %v116, %v462
    %464 = vmatmul.mubr.f32.gmra.mrb[0].mxu0 %v463
    %v465 = vpop.f32.mrb[0].mxu0
    %v466 = vadd.f32 %v357, %v465
    %v467 = vpop.f32.mrb[0].mxu0
    %468 = vdwg.mxu0
    %469 = vmatprep.subr.mxu0 0.0
    %v470 = vand.u32 %v93, 4294901760
    %471 = vmatpush1.msra.mxu0 %v470
    %472 = vmatprep.subr.mxu0 0.0
    %v473 = vand.u32 %v94, 4294901760
    %474 = vmatpush1.msra.mxu0 %v473
    %475 = vmatprep.subr.mxu0 0.0
    %v476 = vand.u32 %v95, 4294901760
    %477 = vmatpush1.msra.mxu0 %v476
    %478 = vmatprep.subr.mxu0 0.0
    %v479 = vand.u32 %v96, 4294901760
    %480 = vmatpush1.msra.mxu0 %v479
    %481 = vmatprep.subr.mxu0 0.0
    %v482 = vand.u32 %v97, 4294901760
    %483 = vmatpush1.msra.mxu0 %v482
    %484 = vmatprep.subr.mxu0 0.0
    %v485 = vand.u32 %v98, 4294901760
    %486 = vmatpush1.msra.mxu0 %v485
    %487 = vmatprep.subr.mxu0 0.0
    %v488 = vand.u32 %v99, 4294901760
    %489 = vmatpush1.msra.mxu0 %v488
    %490 = vmatprep.subr.mxu0 0.0
    %v491 = vand.u32 %v100, 4294901760
    %492 = vmatpush1.msra.mxu0 %v491
    %493 = vmatprep.subr.mxu0 0.0
    %494 = vmatpush1.msra.mxu0 0.0
    %495 = vmatprep.subr.mxu0 0.0
    %496 = vmatpush1.msra.mxu0 0.0
    %497 = vmatprep.subr.mxu0 0.0
    %498 = vmatpush1.msra.mxu0 0.0
    %499 = vmatprep.subr.mxu0 0.0
    %500 = vmatpush1.msra.mxu0 0.0
    %501 = vmatprep.subr.mxu0 0.0
    %502 = vmatpush1.msra.mxu0 0.0
    %503 = vmatprep.subr.mxu0 0.0
    %504 = vmatpush1.msra.mxu0 0.0
    %505 = vmatprep.subr.mxu0 0.0
    %506 = vmatpush1.msra.mxu0 0.0
    %507 = vmatprep.subr.mxu0 0.0
    %508 = vmatpush1.msra.mxu0 0.0
    %509 = vmatprep.subr.mxu0 0.0
    %510 = vmatpush1.msra.mxu0 0.0
    %511 = vmatprep.subr.mxu0 0.0
    %512 = vmatpush1.msra.mxu0 0.0
    %513 = vmatprep.subr.mxu0 0.0
    %514 = vmatpush1.msra.mxu0 0.0
    %515 = vmatprep.subr.mxu0 0.0
    %516 = vmatpush1.msra.mxu0 0.0
    %517 = vmatprep.subr.mxu0 0.0
    %518 = vmatpush1.msra.mxu0 0.0
    %519 = vmatprep.subr.mxu0 0.0
    %520 = vmatpush1.msra.mxu0 0.0
    %521 = vmatprep.subr.mxu0 0.0
    %522 = vmatpush1.msra.mxu0 0.0
    %523 = vmatprep.subr.mxu0 0.0
    %524 = vmatpush1.msra.mxu0 0.0
    %525 = vmatprep.subr.mxu0 0.0
    %526 = vmatpush1.msra.mxu0 0.0
    %527 = vmatprep.subr.mxu0 0.0
    %528 = vmatpush1.msra.mxu0 0.0
    %529 = vmatprep.subr.mxu0 0.0
    %530 = vmatpush1.msra.mxu0 0.0
    %531 = vmatprep.subr.mxu0 0.0
    %532 = vmatpush1.msra.mxu0 0.0
    %533 = vmatprep.subr.mxu0 0.0
    %534 = vmatpush1.msra.mxu0 0.0
    %535 = vmatprep.subr.mxu0 0.0
    %536 = vmatpush1.msra.mxu0 0.0
    %537 = vmatprep.subr.mxu0 0.0
    %538 = vmatpush1.msra.mxu0 0.0
    %539 = vmatprep.subr.mxu0 0.0
    %540 = vmatpush1.msra.mxu0 0.0
    %541 = vmatprep.mubr.f32.mxu0 0.0
    %v542 = vand.u32 %v107, 4294901760
    %v543 = vsub.f32 %v107, %v542
    %v544 = vand.u32 %v543, 4294901760
    %545 = vmatmul.mubr.f32.gmra.mrb[0].mxu0 %v544
    %v546 = vpop.f32.mrb[0].mxu0
    %v547 = vadd.f32 %v445, %v546
    %v548 = vpop.f32.mrb[0].mxu0
    %549 = vmatprep.mubr.f32.mxu0 0.0
    %v550 = vand.u32 %v110, 4294901760
    %v551 = vsub.f32 %v110, %v550
    %v552 = vand.u32 %v551, 4294901760
    %553 = vmatmul.mubr.f32.gmra.mrb[0].mxu0 %v552
    %v554 = vpop.f32.mrb[0].mxu0
    %v555 = vadd.f32 %v452, %v554
    %v556 = vpop.f32.mrb[0].mxu0
    %557 = vmatprep.mubr.f32.mxu0 0.0
    %v558 = vand.u32 %v113, 4294901760
    %v559 = vsub.f32 %v113, %v558
    %v560 = vand.u32 %v559, 4294901760
    %561 = vmatmul.mubr.f32.gmra.mrb[0].mxu0 %v560
    %v562 = vpop.f32.mrb[0].mxu0
    %v563 = vadd.f32 %v459, %v562
    %v564 = vpop.f32.mrb[0].mxu0
    %565 = vmatprep.mubr.f32.mxu0 0.0
    %v566 = vand.u32 %v116, 4294901760
    %v567 = vsub.f32 %v116, %v566
    %v568 = vand.u32 %v567, 4294901760
    %569 = vmatmul.mubr.f32.gmra.mrb[0].mxu0 %v568
    %v570 = vpop.f32.mrb[0].mxu0
    %v571 = vadd.f32 %v466, %v570
    %v572 = vpop.f32.mrb[0].mxu0
    %573 = vdwg.mxu0
    %574 = vmatprep.subr.mxu0 0.0
    %v575 = vand.u32 %v93, 4294901760
    %v576 = vsub.f32 %v93, %v575
    %v577 = vand.u32 %v576, 4294901760
    %578 = vmatpush1.msra.mxu0 %v577
    %579 = vmatprep.subr.mxu0 0.0
    %v580 = vand.u32 %v94, 4294901760
    %v581 = vsub.f32 %v94, %v580
    %v582 = vand.u32 %v581, 4294901760
    %583 = vmatpush1.msra.mxu0 %v582
    %584 = vmatprep.subr.mxu0 0.0
    %v585 = vand.u32 %v95, 4294901760
    %v586 = vsub.f32 %v95, %v585
    %v587 = vand.u32 %v586, 4294901760
    %588 = vmatpush1.msra.mxu0 %v587
    %589 = vmatprep.subr.mxu0 0.0
    %v590 = vand.u32 %v96, 4294901760
    %v591 = vsub.f32 %v96, %v590
    %v592 = vand.u32 %v591, 4294901760
    %593 = vmatpush1.msra.mxu0 %v592
    %594 = vmatprep.subr.mxu0 0.0
    %v595 = vand.u32 %v97, 4294901760
    %v596 = vsub.f32 %v97, %v595
    %v597 = vand.u32 %v596, 4294901760
    %598 = vmatpush1.msra.mxu0 %v597
    %599 = vmatprep.subr.mxu0 0.0
    %v600 = vand.u32 %v98, 4294901760
    %v601 = vsub.f32 %v98, %v600
    %v602 = vand.u32 %v601, 4294901760
    %603 = vmatpush1.msra.mxu0 %v602
    %604 = vmatprep.subr.mxu0 0.0
    %v605 = vand.u32 %v99, 4294901760
    %v606 = vsub.f32 %v99, %v605
    %v607 = vand.u32 %v606, 4294901760
    %608 = vmatpush1.msra.mxu0 %v607
    %609 = vmatprep.subr.mxu0 0.0
    %v610 = vand.u32 %v100, 4294901760
    %v611 = vsub.f32 %v100, %v610
    %v612 = vand.u32 %v611, 4294901760
    %613 = vmatpush1.msra.mxu0 %v612
    %614 = vmatprep.subr.mxu0 0.0
    %615 = vmatpush1.msra.mxu0 0.0
    %616 = vmatprep.subr.mxu0 0.0
    %617 = vmatpush1.msra.mxu0 0.0
    %618 = vmatprep.subr.mxu0 0.0
    %619 = vmatpush1.msra.mxu0 0.0
    %620 = vmatprep.subr.mxu0 0.0
    %621 = vmatpush1.msra.mxu0 0.0
    %622 = vmatprep.subr.mxu0 0.0
    %623 = vmatpush1.msra.mxu0 0.0
    %624 = vmatprep.subr.mxu0 0.0
    %625 = vmatpush1.msra.mxu0 0.0
    %626 = vmatprep.subr.mxu0 0.0
    %627 = vmatpush1.msra.mxu0 0.0
    %628 = vmatprep.subr.mxu0 0.0
    %629 = vmatpush1.msra.mxu0 0.0
    %630 = vmatprep.subr.mxu0 0.0
    %631 = vmatpush1.msra.mxu0 0.0
    %632 = vmatprep.subr.mxu0 0.0
    %633 = vmatpush1.msra.mxu0 0.0
    %634 = vmatprep.subr.mxu0 0.0
    %635 = vmatpush1.msra.mxu0 0.0
    %636 = vmatprep.subr.mxu0 0.0
    %637 = vmatpush1.msra.mxu0 0.0
    %638 = vmatprep.subr.mxu0 0.0
    %639 = vmatpush1.msra.mxu0 0.0
    %640 = vmatprep.subr.mxu0 0.0
    %641 = vmatpush1.msra.mxu0 0.0
    %642 = vmatprep.subr.mxu0 0.0
    %643 = vmatpush1.msra.mxu0 0.0
    %644 = vmatprep.subr.mxu0 0.0
    %645 = vmatpush1.msra.mxu0 0.0
    %646 = vmatprep.subr.mxu0 0.0
    %647 = vmatpush1.msra.mxu0 0.0
    %648 = vmatprep.subr.mxu0 0.0
    %649 = vmatpush1.msra.mxu0 0.0
    %650 = vmatprep.subr.mxu0 0.0
    %651 = vmatpush1.msra.mxu0 0.0
    %652 = vmatprep.subr.mxu0 0.0
    %653 = vmatpush1.msra.mxu0 0.0
    %654 = vmatprep.subr.mxu0 0.0
    %655 = vmatpush1.msra.mxu0 0.0
    %656 = vmatprep.subr.mxu0 0.0
    %657 = vmatpush1.msra.mxu0 0.0
    %658 = vmatprep.subr.mxu0 0.0
    %659 = vmatpush1.msra.mxu0 0.0
    %660 = vmatprep.subr.mxu0 0.0
    %661 = vmatpush1.msra.mxu0 0.0
    %662 = vmatprep.mubr.f32.mxu0 0.0
    %v663 = vand.u32 %v107, 4294901760
    %664 = vmatmul.mubr.f32.gmra.mrb[0].mxu0 %v663
    %v665 = vpop.f32.mrb[0].mxu0
    %v666 = vadd.f32 %v547, %v665
    %v667 = vpop.f32.mrb[0].mxu0
    %668 = vmatprep.mubr.f32.mxu0 0.0
    %v669 = vand.u32 %v110, 4294901760
    %670 = vmatmul.mubr.f32.gmra.mrb[0].mxu0 %v669
    %v671 = vpop.f32.mrb[0].mxu0
    %v672 = vadd.f32 %v555, %v671
    %v673 = vpop.f32.mrb[0].mxu0
    %674 = vmatprep.mubr.f32.mxu0 0.0
    %v675 = vand.u32 %v113, 4294901760
    %676 = vmatmul.mubr.f32.gmra.mrb[0].mxu0 %v675
    %v677 = vpop.f32.mrb[0].mxu0
    %v678 = vadd.f32 %v563, %v677
    %v679 = vpop.f32.mrb[0].mxu0
    %680 = vmatprep.mubr.f32.mxu0 0.0
    %v681 = vand.u32 %v116, 4294901760
    %682 = vmatmul.mubr.f32.gmra.mrb[0].mxu0 %v681
    %v683 = vpop.f32.mrb[0].mxu0
    %v684 = vadd.f32 %v571, %v683
    %v685 = vpop.f32.mrb[0].mxu0
    %686 = vdwg.mxu0
    %687 = vmatprep.subr.mxu0 0.0
    %v688 = vand.u32 %v93, 4294901760
    %689 = vmatpush1.msra.mxu0 %v688
    %690 = vmatprep.subr.mxu0 0.0
    %v691 = vand.u32 %v94, 4294901760
    %692 = vmatpush1.msra.mxu0 %v691
    %693 = vmatprep.subr.mxu0 0.0
    %v694 = vand.u32 %v95, 4294901760
    %695 = vmatpush1.msra.mxu0 %v694
    %696 = vmatprep.subr.mxu0 0.0
    %v697 = vand.u32 %v96, 4294901760
    %698 = vmatpush1.msra.mxu0 %v697
    %699 = vmatprep.subr.mxu0 0.0
    %v700 = vand.u32 %v97, 4294901760
    %701 = vmatpush1.msra.mxu0 %v700
    %702 = vmatprep.subr.mxu0 0.0
    %v703 = vand.u32 %v98, 4294901760
    %704 = vmatpush1.msra.mxu0 %v703
    %705 = vmatprep.subr.mxu0 0.0
    %v706 = vand.u32 %v99, 4294901760
    %707 = vmatpush1.msra.mxu0 %v706
    %708 = vmatprep.subr.mxu0 0.0
    %v709 = vand.u32 %v100, 4294901760
    %710 = vmatpush1.msra.mxu0 %v709
    %711 = vmatprep.subr.mxu0 0.0
    %712 = vmatpush1.msra.mxu0 0.0
    %713 = vmatprep.subr.mxu0 0.0
    %714 = vmatpush1.msra.mxu0 0.0
    %715 = vmatprep.subr.mxu0 0.0
    %716 = vmatpush1.msra.mxu0 0.0
    %717 = vmatprep.subr.mxu0 0.0
    %718 = vmatpush1.msra.mxu0 0.0
    %719 = vmatprep.subr.mxu0 0.0
    %720 = vmatpush1.msra.mxu0 0.0
    %721 = vmatprep.subr.mxu0 0.0
    %722 = vmatpush1.msra.mxu0 0.0
    %723 = vmatprep.subr.mxu0 0.0
    %724 = vmatpush1.msra.mxu0 0.0
    %725 = vmatprep.subr.mxu0 0.0
    %726 = vmatpush1.msra.mxu0 0.0
    %727 = vmatprep.subr.mxu0 0.0
    %728 = vmatpush1.msra.mxu0 0.0
    %729 = vmatprep.subr.mxu0 0.0
    %730 = vmatpush1.msra.mxu0 0.0
    %731 = vmatprep.subr.mxu0 0.0
    %732 = vmatpush1.msra.mxu0 0.0
    %733 = vmatprep.subr.mxu0 0.0
    %734 = vmatpush1.msra.mxu0 0.0
    %735 = vmatprep.subr.mxu0 0.0
    %736 = vmatpush1.msra.mxu0 0.0
    %737 = vmatprep.subr.mxu0 0.0
    %738 = vmatpush1.msra.mxu0 0.0
    %739 = vmatprep.subr.mxu0 0.0
    %740 = vmatpush1.msra.mxu0 0.0
    %741 = vmatprep.subr.mxu0 0.0
    %742 = vmatpush1.msra.mxu0 0.0
    %743 = vmatprep.subr.mxu0 0.0
    %744 = vmatpush1.msra.mxu0 0.0
    %745 = vmatprep.subr.mxu0 0.0
    %746 = vmatpush1.msra.mxu0 0.0
    %747 = vmatprep.subr.mxu0 0.0
    %748 = vmatpush1.msra.mxu0 0.0
    %749 = vmatprep.subr.mxu0 0.0
    %750 = vmatpush1.msra.mxu0 0.0
    %751 = vmatprep.subr.mxu0 0.0
    %752 = vmatpush1.msra.mxu0 0.0
    %753 = vmatprep.subr.mxu0 0.0
    %754 = vmatpush1.msra.mxu0 0.0
    %755 = vmatprep.subr.mxu0 0.0
    %756 = vmatpush1.msra.mxu0 0.0
    %757 = vmatprep.subr.mxu0 0.0
    %758 = vmatpush1.msra.mxu0 0.0
    %759 = vmatprep.mubr.f32.mxu0 0.0
    %v760 = vand.u32 %v107, 4294901760
    %761 = vmatmul.mubr.f32.gmra.mrb[0].mxu0 %v760
    %v762 = vpop.f32.mrb[0].mxu0
    %v763 = vadd.f32 %v666, %v762
    %v764 = vpop.f32.mrb[0].mxu0
    %765 = vmatprep.mubr.f32.mxu0 0.0
    %v766 = vand.u32 %v110, 4294901760
    %767 = vmatmul.mubr.f32.gmra.mrb[0].mxu0 %v766
    %v768 = vpop.f32.mrb[0].mxu0
    %v769 = vadd.f32 %v672, %v768
    %v770 = vpop.f32.mrb[0].mxu0
    %771 = vmatprep.mubr.f32.mxu0 0.0
    %v772 = vand.u32 %v113, 4294901760
    %773 = vmatmul.mubr.f32.gmra.mrb[0].mxu0 %v772
    %v774 = vpop.f32.mrb[0].mxu0
    %v775 = vadd.f32 %v678, %v774
    %v776 = vpop.f32.mrb[0].mxu0
    %777 = vmatprep.mubr.f32.mxu0 0.0
    %v778 = vand.u32 %v116, 4294901760
    %779 = vmatmul.mubr.f32.gmra.mrb[0].mxu0 %v778
    %v780 = vpop.f32.mrb[0].mxu0
    %v781 = vadd.f32 %v684, %v780
    %v782 = vpop.f32.mrb[0].mxu0
    %783 = vdwg.mxu0
    %v784 = vld [vmem:[%s1] sm:$0x1]
    %v785 = vadd.s32 %v65, 64
    %v786 = vadd.s32 %v65, 72
    %v787 = vadd.s32 %v65, 80
    %v788 = vadd.s32 %v65, 88
    %v789 = vadd.s32 %v65, 96
    %v790 = vadd.s32 %v65, 104
    %v791 = vadd.s32 %v65, 112
    %v792 = vadd.s32 %v65, 120
    %v793 = vlaneseq
    %v794 = vshrl.u32 %v793, 7
    %v795 = vsub.s32 0, %v794
    %v796 = vrot.slane %v784, %v795
    %vm797 = vcmp.eq.s32.totalorder %v65, %v796
    %vm798 = vcmp.eq.s32.totalorder %v66, %v796
    %vm799 = vcmp.eq.s32.totalorder %v67, %v796
    %vm800 = vcmp.eq.s32.totalorder %v68, %v796
    %vm801 = vcmp.eq.s32.totalorder %v69, %v796
    %vm802 = vcmp.eq.s32.totalorder %v70, %v796
    %vm803 = vcmp.eq.s32.totalorder %v71, %v796
    %vm804 = vcmp.eq.s32.totalorder %v72, %v796
    %vm805 = vcmp.eq.s32.totalorder %v785, %v796
    %vm806 = vcmp.eq.s32.totalorder %v786, %v796
    %vm807 = vcmp.eq.s32.totalorder %v787, %v796
    %vm808 = vcmp.eq.s32.totalorder %v788, %v796
    %vm809 = vcmp.eq.s32.totalorder %v789, %v796
    %vm810 = vcmp.eq.s32.totalorder %v790, %v796
    %vm811 = vcmp.eq.s32.totalorder %v791, %v796
    %vm812 = vcmp.eq.s32.totalorder %v792, %v796
    %v813 = vsel %vm797, 1, 0
    %v814 = vsel %vm798, 1, 0
    %v815 = vsel %vm799, 1, 0
    %v816 = vsel %vm800, 1, 0
    %v817 = vsel %vm801, 1, 0
    %v818 = vsel %vm802, 1, 0
    %v819 = vsel %vm803, 1, 0
    %v820 = vsel %vm804, 1, 0
    %v821 = vsel %vm805, 1, 0
    %v822 = vsel %vm806, 1, 0
    %v823 = vsel %vm807, 1, 0
    %v824 = vsel %vm808, 1, 0
    %v825 = vsel %vm809, 1, 0
    %v826 = vsel %vm810, 1, 0
    %v827 = vsel %vm811, 1, 0
    %v828 = vsel %vm812, 1, 0
    %v829 = vcvt.s32.f32 %v813
    %v830 = vcvt.s32.f32 %v814
    %v831 = vcvt.s32.f32 %v815
    %v832 = vcvt.s32.f32 %v816
    %v833 = vcvt.s32.f32 %v817
    %v834 = vcvt.s32.f32 %v818
    %v835 = vcvt.s32.f32 %v819
    %v836 = vcvt.s32.f32 %v820
    %v837 = vcvt.s32.f32 %v821
    %v838 = vcvt.s32.f32 %v822
    %v839 = vcvt.s32.f32 %v823
    %v840 = vcvt.s32.f32 %v824
    %v841 = vcvt.s32.f32 %v825
    %v842 = vcvt.s32.f32 %v826
    %v843 = vcvt.s32.f32 %v827
    %v844 = vcvt.s32.f32 %v828
    %v845 = vld [vmem:[#allocation7] sm:$0xff]
    %v846 = vld [vmem:[#allocation7 + $0x8] sm:$0xff]
    %v847 = vld [vmem:[#allocation7 + $0x10] sm:$0xff]
    %v848 = vld [vmem:[#allocation7 + $0x18] sm:$0xff]
    %849 = vmatprep.subr.mxu0 0.0
    %v850 = vand.u32 %v829, 4294901760
    %851 = vmatpush1.msra.mxu0 %v850
    %852 = vmatprep.subr.mxu0 0.0
    %v853 = vand.u32 %v830, 4294901760
    %854 = vmatpush1.msra.mxu0 %v853
    %855 = vmatprep.subr.mxu0 0.0
    %v856 = vand.u32 %v831, 4294901760
    %857 = vmatpush1.msra.mxu0 %v856
    %858 = vmatprep.subr.mxu0 0.0
    %v859 = vand.u32 %v832, 4294901760
    %860 = vmatpush1.msra.mxu0 %v859
    %861 = vmatprep.subr.mxu0 0.0
    %v862 = vand.u32 %v833, 4294901760
    %863 = vmatpush1.msra.mxu0 %v862
    %864 = vmatprep.subr.mxu0 0.0
    %v865 = vand.u32 %v834, 4294901760
    %866 = vmatpush1.msra.mxu0 %v865
    %867 = vmatprep.subr.mxu0 0.0
    %v868 = vand.u32 %v835, 4294901760
    %869 = vmatpush1.msra.mxu0 %v868
    %870 = vmatprep.subr.mxu0 0.0
    %v871 = vand.u32 %v836, 4294901760
    %872 = vmatpush1.msra.mxu0 %v871
    %873 = vmatprep.subr.mxu0 0.0
    %v874 = vand.u32 %v837, 4294901760
    %875 = vmatpush1.msra.mxu0 %v874
    %876 = vmatprep.subr.mxu0 0.0
    %v877 = vand.u32 %v838, 4294901760
    %878 = vmatpush1.msra.mxu0 %v877
    %879 = vmatprep.subr.mxu0 0.0
    %v880 = vand.u32 %v839, 4294901760
    %881 = vmatpush1.msra.mxu0 %v880
    %882 = vmatprep.subr.mxu0 0.0
    %v883 = vand.u32 %v840, 4294901760
    %884 = vmatpush1.msra.mxu0 %v883
    %885 = vmatprep.subr.mxu0 0.0
    %v886 = vand.u32 %v841, 4294901760
    %887 = vmatpush1.msra.mxu0 %v886
    %888 = vmatprep.subr.mxu0 0.0
    %v889 = vand.u32 %v842, 4294901760
    %890 = vmatpush1.msra.mxu0 %v889
    %891 = vmatprep.subr.mxu0 0.0
    %v892 = vand.u32 %v843, 4294901760
    %893 = vmatpush1.msra.mxu0 %v892
    %894 = vmatprep.subr.mxu0 0.0
    %v895 = vand.u32 %v844, 4294901760
    %896 = vmatpush1.msra.mxu0 %v895
    %897 = vmatprep.subr.mxu0 0.0
    %898 = vmatpush1.msra.mxu0 0.0
    %899 = vmatprep.subr.mxu0 0.0
    %900 = vmatpush1.msra.mxu0 0.0
    %901 = vmatprep.subr.mxu0 0.0
    %902 = vmatpush1.msra.mxu0 0.0
    %903 = vmatprep.subr.mxu0 0.0
    %904 = vmatpush1.msra.mxu0 0.0
    %905 = vmatprep.subr.mxu0 0.0
    %906 = vmatpush1.msra.mxu0 0.0
    %907 = vmatprep.subr.mxu0 0.0
    %908 = vmatpush1.msra.mxu0 0.0
    %909 = vmatprep.subr.mxu0 0.0
    %910 = vmatpush1.msra.mxu0 0.0
    %911 = vmatprep.subr.mxu0 0.0
    %912 = vmatpush1.msra.mxu0 0.0
    %913 = vmatprep.subr.mxu0 0.0
    %914 = vmatpush1.msra.mxu0 0.0
    %915 = vmatprep.subr.mxu0 0.0
    %916 = vmatpush1.msra.mxu0 0.0
    %917 = vmatprep.subr.mxu0 0.0
    %918 = vmatpush1.msra.mxu0 0.0
    %919 = vmatprep.subr.mxu0 0.0
    %920 = vmatpush1.msra.mxu0 0.0
    %921 = vmatprep.subr.mxu0 0.0
    %922 = vmatpush1.msra.mxu0 0.0
    %923 = vmatprep.subr.mxu0 0.0
    %924 = vmatpush1.msra.mxu0 0.0
    %925 = vmatprep.subr.mxu0 0.0
    %926 = vmatpush1.msra.mxu0 0.0
    %927 = vmatprep.subr.mxu0 0.0
    %928 = vmatpush1.msra.mxu0 0.0
    %929 = vmatprep.mubr.f32.mxu0 0.0
    %v930 = vand.u32 %v845, 4294901760
    %v931 = vsub.f32 %v845, %v930
    %v932 = vand.u32 %v931, 4294901760
    %v933 = vsub.f32 %v931, %v932
    %v934 = vand.u32 %v933, 4294901760
    %935 = vmatmul.mubr.f32.gmra.mrb[0].mxu0 %v934
    %v936 = vpop.f32.mrb[0].mxu0
    %v937 = vadd.f32 0.0, %v936
    %v938 = vpop.f32.mrb[0].mxu0
    %939 = vmatprep.mubr.f32.mxu0 0.0
    %v940 = vand.u32 %v846, 4294901760
    %v941 = vsub.f32 %v846, %v940
    %v942 = vand.u32 %v941, 4294901760
    %v943 = vsub.f32 %v941, %v942
    %v944 = vand.u32 %v943, 4294901760
    %945 = vmatmul.mubr.f32.gmra.mrb[0].mxu0 %v944
    %v946 = vpop.f32.mrb[0].mxu0
    %v947 = vadd.f32 0.0, %v946
    %v948 = vpop.f32.mrb[0].mxu0
    %949 = vmatprep.mubr.f32.mxu0 0.0
    %v950 = vand.u32 %v847, 4294901760
    %v951 = vsub.f32 %v847, %v950
    %v952 = vand.u32 %v951, 4294901760
    %v953 = vsub.f32 %v951, %v952
    %v954 = vand.u32 %v953, 4294901760
    %955 = vmatmul.mubr.f32.gmra.mrb[0].mxu0 %v954
    %v956 = vpop.f32.mrb[0].mxu0
    %v957 = vadd.f32 0.0, %v956
    %v958 = vpop.f32.mrb[0].mxu0
    %959 = vmatprep.mubr.f32.mxu0 0.0
    %v960 = vand.u32 %v848, 4294901760
    %v961 = vsub.f32 %v848, %v960
    %v962 = vand.u32 %v961, 4294901760
    %v963 = vsub.f32 %v961, %v962
    %v964 = vand.u32 %v963, 4294901760
    %965 = vmatmul.mubr.f32.gmra.mrb[0].mxu0 %v964
    %v966 = vpop.f32.mrb[0].mxu0
    %v967 = vadd.f32 0.0, %v966
    %v968 = vpop.f32.mrb[0].mxu0
    %969 = vdwg.mxu0
    %970 = vmatprep.subr.mxu0 0.0
    %v971 = vand.u32 %v829, 4294901760
    %v972 = vsub.f32 %v829, %v971
    %v973 = vand.u32 %v972, 4294901760
    %v974 = vsub.f32 %v972, %v973
    %v975 = vand.u32 %v974, 4294901760
    %976 = vmatpush1.msra.mxu0 %v975
    %977 = vmatprep.subr.mxu0 0.0
    %v978 = vand.u32 %v830, 4294901760
    %v979 = vsub.f32 %v830, %v978
    %v980 = vand.u32 %v979, 4294901760
    %v981 = vsub.f32 %v979, %v980
    %v982 = vand.u32 %v981, 4294901760
    %983 = vmatpush1.msra.mxu0 %v982
    %984 = vmatprep.subr.mxu0 0.0
    %v985 = vand.u32 %v831, 4294901760
    %v986 = vsub.f32 %v831, %v985
    %v987 = vand.u32 %v986, 4294901760
    %v988 = vsub.f32 %v986, %v987
    %v989 = vand.u32 %v988, 4294901760
    %990 = vmatpush1.msra.mxu0 %v989
    %991 = vmatprep.subr.mxu0 0.0
    %v992 = vand.u32 %v832, 4294901760
    %v993 = vsub.f32 %v832, %v992
    %v994 = vand.u32 %v993, 4294901760
    %v995 = vsub.f32 %v993, %v994
    %v996 = vand.u32 %v995, 4294901760
    %997 = vmatpush1.msra.mxu0 %v996
    %998 = vmatprep.subr.mxu0 0.0
    %v999 = vand.u32 %v833, 4294901760
    %v1000 = vsub.f32 %v833, %v999
    %v1001 = vand.u32 %v1000, 4294901760
    %v1002 = vsub.f32 %v1000, %v1001
    %v1003 = vand.u32 %v1002, 4294901760
    %1004 = vmatpush1.msra.mxu0 %v1003
    %1005 = vmatprep.subr.mxu0 0.0
    %v1006 = vand.u32 %v834, 4294901760
    %v1007 = vsub.f32 %v834, %v1006
    %v1008 = vand.u32 %v1007, 4294901760
    %v1009 = vsub.f32 %v1007, %v1008
    %v1010 = vand.u32 %v1009, 4294901760
    %1011 = vmatpush1.msra.mxu0 %v1010
    %1012 = vmatprep.subr.mxu0 0.0
    %v1013 = vand.u32 %v835, 4294901760
    %v1014 = vsub.f32 %v835, %v1013
    %v1015 = vand.u32 %v1014, 4294901760
    %v1016 = vsub.f32 %v1014, %v1015
    %v1017 = vand.u32 %v1016, 4294901760
    %1018 = vmatpush1.msra.mxu0 %v1017
    %1019 = vmatprep.subr.mxu0 0.0
    %v1020 = vand.u32 %v836, 4294901760
    %v1021 = vsub.f32 %v836, %v1020
    %v1022 = vand.u32 %v1021, 4294901760
    %v1023 = vsub.f32 %v1021, %v1022
    %v1024 = vand.u32 %v1023, 4294901760
    %1025 = vmatpush1.msra.mxu0 %v1024
    %1026 = vmatprep.subr.mxu0 0.0
    %v1027 = vand.u32 %v837, 4294901760
    %v1028 = vsub.f32 %v837, %v1027
    %v1029 = vand.u32 %v1028, 4294901760
    %v1030 = vsub.f32 %v1028, %v1029
    %v1031 = vand.u32 %v1030, 4294901760
    %1032 = vmatpush1.msra.mxu0 %v1031
    %1033 = vmatprep.subr.mxu0 0.0
    %v1034 = vand.u32 %v838, 4294901760
    %v1035 = vsub.f32 %v838, %v1034
    %v1036 = vand.u32 %v1035, 4294901760
    %v1037 = vsub.f32 %v1035, %v1036
    %v1038 = vand.u32 %v1037, 4294901760
    %1039 = vmatpush1.msra.mxu0 %v1038
    %1040 = vmatprep.subr.mxu0 0.0
    %v1041 = vand.u32 %v839, 4294901760
    %v1042 = vsub.f32 %v839, %v1041
    %v1043 = vand.u32 %v1042, 4294901760
    %v1044 = vsub.f32 %v1042, %v1043
    %v1045 = vand.u32 %v1044, 4294901760
    %1046 = vmatpush1.msra.mxu0 %v1045
    %1047 = vmatprep.subr.mxu0 0.0
    %v1048 = vand.u32 %v840, 4294901760
    %v1049 = vsub.f32 %v840, %v1048
    %v1050 = vand.u32 %v1049, 4294901760
    %v1051 = vsub.f32 %v1049, %v1050
    %v1052 = vand.u32 %v1051, 4294901760
    %1053 = vmatpush1.msra.mxu0 %v1052
    %1054 = vmatprep.subr.mxu0 0.0
    %v1055 = vand.u32 %v841, 4294901760
    %v1056 = vsub.f32 %v841, %v1055
    %v1057 = vand.u32 %v1056, 4294901760
    %v1058 = vsub.f32 %v1056, %v1057
    %v1059 = vand.u32 %v1058, 4294901760
    %1060 = vmatpush1.msra.mxu0 %v1059
    %1061 = vmatprep.subr.mxu0 0.0
    %v1062 = vand.u32 %v842, 4294901760
    %v1063 = vsub.f32 %v842, %v1062
    %v1064 = vand.u32 %v1063, 4294901760
    %v1065 = vsub.f32 %v1063, %v1064
    %v1066 = vand.u32 %v1065, 4294901760
    %1067 = vmatpush1.msra.mxu0 %v1066
    %1068 = vmatprep.subr.mxu0 0.0
    %v1069 = vand.u32 %v843, 4294901760
    %v1070 = vsub.f32 %v843, %v1069
    %v1071 = vand.u32 %v1070, 4294901760
    %v1072 = vsub.f32 %v1070, %v1071
    %v1073 = vand.u32 %v1072, 4294901760
    %1074 = vmatpush1.msra.mxu0 %v1073
    %1075 = vmatprep.subr.mxu0 0.0
    %v1076 = vand.u32 %v844, 4294901760
    %v1077 = vsub.f32 %v844, %v1076
    %v1078 = vand.u32 %v1077, 4294901760
    %v1079 = vsub.f32 %v1077, %v1078
    %v1080 = vand.u32 %v1079, 4294901760
    %1081 = vmatpush1.msra.mxu0 %v1080
    %1082 = vmatprep.subr.mxu0 0.0
    %1083 = vmatpush1.msra.mxu0 0.0
    %1084 = vmatprep.subr.mxu0 0.0
    %1085 = vmatpush1.msra.mxu0 0.0
    %1086 = vmatprep.subr.mxu0 0.0
    %1087 = vmatpush1.msra.mxu0 0.0
    %1088 = vmatprep.subr.mxu0 0.0
    %1089 = vmatpush1.msra.mxu0 0.0
    %1090 = vmatprep.subr.mxu0 0.0
    %1091 = vmatpush1.msra.mxu0 0.0
    %1092 = vmatprep.subr.mxu0 0.0
    %1093 = vmatpush1.msra.mxu0 0.0
    %1094 = vmatprep.subr.mxu0 0.0
    %1095 = vmatpush1.msra.mxu0 0.0
    %1096 = vmatprep.subr.mxu0 0.0
    %1097 = vmatpush1.msra.mxu0 0.0
    %1098 = vmatprep.subr.mxu0 0.0
    %1099 = vmatpush1.msra.mxu0 0.0
    %1100 = vmatprep.subr.mxu0 0.0
    %1101 = vmatpush1.msra.mxu0 0.0
    %1102 = vmatprep.subr.mxu0 0.0
    %1103 = vmatpush1.msra.mxu0 0.0
    %1104 = vmatprep.subr.mxu0 0.0
    %1105 = vmatpush1.msra.mxu0 0.0
    %1106 = vmatprep.subr.mxu0 0.0
    %1107 = vmatpush1.msra.mxu0 0.0
    %1108 = vmatprep.subr.mxu0 0.0
    %1109 = vmatpush1.msra.mxu0 0.0
    %1110 = vmatprep.subr.mxu0 0.0
    %1111 = vmatpush1.msra.mxu0 0.0
    %1112 = vmatprep.subr.mxu0 0.0
    %1113 = vmatpush1.msra.mxu0 0.0
    %1114 = vmatprep.mubr.f32.mxu0 0.0
    %v1115 = vand.u32 %v845, 4294901760
    %1116 = vmatmul.mubr.f32.gmra.mrb[0].mxu0 %v1115
    %v1117 = vpop.f32.mrb[0].mxu0
    %v1118 = vadd.f32 %v937, %v1117
    %v1119 = vpop.f32.mrb[0].mxu0
    %1120 = vmatprep.mubr.f32.mxu0 0.0
    %v1121 = vand.u32 %v846, 4294901760
    %1122 = vmatmul.mubr.f32.gmra.mrb[0].mxu0 %v1121
    %v1123 = vpop.f32.mrb[0].mxu0
    %v1124 = vadd.f32 %v947, %v1123
    %v1125 = vpop.f32.mrb[0].mxu0
    %1126 = vmatprep.mubr.f32.mxu0 0.0
    %v1127 = vand.u32 %v847, 4294901760
    %1128 = vmatmul.mubr.f32.gmra.mrb[0].mxu0 %v1127
    %v1129 = vpop.f32.mrb[0].mxu0
    %v1130 = vadd.f32 %v957, %v1129
    %v1131 = vpop.f32.mrb[0].mxu0
    %1132 = vmatprep.mubr.f32.mxu0 0.0
    %v1133 = vand.u32 %v848, 4294901760
    %1134 = vmatmul.mubr.f32.gmra.mrb[0].mxu0 %v1133
    %v1135 = vpop.f32.mrb[0].mxu0
    %v1136 = vadd.f32 %v967, %v1135
    %v1137 = vpop.f32.mrb[0].mxu0
    %1138 = vdwg.mxu0
    %1139 = vmatprep.subr.mxu0 0.0
    %v1140 = vand.u32 %v829, 4294901760
    %v1141 = vsub.f32 %v829, %v1140
    %1142 = vmatpush1.msra.mxu0 %v1141
    %1143 = vmatprep.subr.mxu0 0.0
    %v1144 = vand.u32 %v830, 4294901760
    %v1145 = vsub.f32 %v830, %v1144
    %1146 = vmatpush1.msra.mxu0 %v1145
    %1147 = vmatprep.subr.mxu0 0.0
    %v1148 = vand.u32 %v831, 4294901760
    %v1149 = vsub.f32 %v831, %v1148
    %1150 = vmatpush1.msra.mxu0 %v1149
    %1151 = vmatprep.subr.mxu0 0.0
    %v1152 = vand.u32 %v832, 4294901760
    %v1153 = vsub.f32 %v832, %v1152
    %1154 = vmatpush1.msra.mxu0 %v1153
    %1155 = vmatprep.subr.mxu0 0.0
    %v1156 = vand.u32 %v833, 4294901760
    %v1157 = vsub.f32 %v833, %v1156
    %1158 = vmatpush1.msra.mxu0 %v1157
    %1159 = vmatprep.subr.mxu0 0.0
    %v1160 = vand.u32 %v834, 4294901760
    %v1161 = vsub.f32 %v834, %v1160
    %1162 = vmatpush1.msra.mxu0 %v1161
    %1163 = vmatprep.subr.mxu0 0.0
    %v1164 = vand.u32 %v835, 4294901760
    %v1165 = vsub.f32 %v835, %v1164
    %1166 = vmatpush1.msra.mxu0 %v1165
    %1167 = vmatprep.subr.mxu0 0.0
    %v1168 = vand.u32 %v836, 4294901760
    %v1169 = vsub.f32 %v836, %v1168
    %1170 = vmatpush1.msra.mxu0 %v1169
    %1171 = vmatprep.subr.mxu0 0.0
    %v1172 = vand.u32 %v837, 4294901760
    %v1173 = vsub.f32 %v837, %v1172
    %1174 = vmatpush1.msra.mxu0 %v1173
    %1175 = vmatprep.subr.mxu0 0.0
    %v1176 = vand.u32 %v838, 4294901760
    %v1177 = vsub.f32 %v838, %v1176
    %1178 = vmatpush1.msra.mxu0 %v1177
    %1179 = vmatprep.subr.mxu0 0.0
    %v1180 = vand.u32 %v839, 4294901760
    %v1181 = vsub.f32 %v839, %v1180
    %1182 = vmatpush1.msra.mxu0 %v1181
    %1183 = vmatprep.subr.mxu0 0.0
    %v1184 = vand.u32 %v840, 4294901760
    %v1185 = vsub.f32 %v840, %v1184
    %1186 = vmatpush1.msra.mxu0 %v1185
    %1187 = vmatprep.subr.mxu0 0.0
    %v1188 = vand.u32 %v841, 4294901760
    %v1189 = vsub.f32 %v841, %v1188
    %1190 = vmatpush1.msra.mxu0 %v1189
    %1191 = vmatprep.subr.mxu0 0.0
    %v1192 = vand.u32 %v842, 4294901760
    %v1193 = vsub.f32 %v842, %v1192
    %1194 = vmatpush1.msra.mxu0 %v1193
    %1195 = vmatprep.subr.mxu0 0.0
    %v1196 = vand.u32 %v843, 4294901760
    %v1197 = vsub.f32 %v843, %v1196
    %1198 = vmatpush1.msra.mxu0 %v1197
    %1199 = vmatprep.subr.mxu0 0.0
    %v1200 = vand.u32 %v844, 4294901760
    %v1201 = vsub.f32 %v844, %v1200
    %1202 = vmatpush1.msra.mxu0 %v1201
    %1203 = vmatprep.subr.mxu0 0.0
    %1204 = vmatpush1.msra.mxu0 0.0
    %1205 = vmatprep.subr.mxu0 0.0
    %1206 = vmatpush1.msra.mxu0 0.0
    %1207 = vmatprep.subr.mxu0 0.0
    %1208 = vmatpush1.msra.mxu0 0.0
    %1209 = vmatprep.subr.mxu0 0.0
    %1210 = vmatpush1.msra.mxu0 0.0
    %1211 = vmatprep.subr.mxu0 0.0
    %1212 = vmatpush1.msra.mxu0 0.0
    %1213 = vmatprep.subr.mxu0 0.0
    %1214 = vmatpush1.msra.mxu0 0.0
    %1215 = vmatprep.subr.mxu0 0.0
    %1216 = vmatpush1.msra.mxu0 0.0
    %1217 = vmatprep.subr.mxu0 0.0
    %1218 = vmatpush1.msra.mxu0 0.0
    %1219 = vmatprep.subr.mxu0 0.0
    %1220 = vmatpush1.msra.mxu0 0.0
    %1221 = vmatprep.subr.mxu0 0.0
    %1222 = vmatpush1.msra.mxu0 0.0
    %1223 = vmatprep.subr.mxu0 0.0
    %1224 = vmatpush1.msra.mxu0 0.0
    %1225 = vmatprep.subr.mxu0 0.0
    %1226 = vmatpush1.msra.mxu0 0.0
    %1227 = vmatprep.subr.mxu0 0.0
    %1228 = vmatpush1.msra.mxu0 0.0
    %1229 = vmatprep.subr.mxu0 0.0
    %1230 = vmatpush1.msra.mxu0 0.0
    %1231 = vmatprep.subr.mxu0 0.0
    %1232 = vmatpush1.msra.mxu0 0.0
    %1233 = vmatprep.subr.mxu0 0.0
    %1234 = vmatpush1.msra.mxu0 0.0
    %1235 = vmatprep.mubr.f32.mxu0 0.0
    %v1236 = vand.u32 %v845, 4294901760
    %v1237 = vsub.f32 %v845, %v1236
    %1238 = vmatmul.mubr.f32.gmra.mrb[0].mxu0 %v1237
    %v1239 = vpop.f32.mrb[0].mxu0
    %v1240 = vadd.f32 %v1118, %v1239
    %v1241 = vpop.f32.mrb[0].mxu0
    %1242 = vmatprep.mubr.f32.mxu0 0.0
    %v1243 = vand.u32 %v846, 4294901760
    %v1244 = vsub.f32 %v846, %v1243
    %1245 = vmatmul.mubr.f32.gmra.mrb[0].mxu0 %v1244
    %v1246 = vpop.f32.mrb[0].mxu0
    %v1247 = vadd.f32 %v1124, %v1246
    %v1248 = vpop.f32.mrb[0].mxu0
    %1249 = vmatprep.mubr.f32.mxu0 0.0
    %v1250 = vand.u32 %v847, 4294901760
    %v1251 = vsub.f32 %v847, %v1250
    %1252 = vmatmul.mubr.f32.gmra.mrb[0].mxu0 %v1251
    %v1253 = vpop.f32.mrb[0].mxu0
    %v1254 = vadd.f32 %v1130, %v1253
    %v1255 = vpop.f32.mrb[0].mxu0
    %1256 = vmatprep.mubr.f32.mxu0 0.0
    %v1257 = vand.u32 %v848, 4294901760
    %v1258 = vsub.f32 %v848, %v1257
    %1259 = vmatmul.mubr.f32.gmra.mrb[0].mxu0 %v1258
    %v1260 = vpop.f32.mrb[0].mxu0
    %v1261 = vadd.f32 %v1136, %v1260
    %v1262 = vpop.f32.mrb[0].mxu0
    %1263 = vdwg.mxu0
    %1264 = vmatprep.subr.mxu0 0.0
    %v1265 = vand.u32 %v829, 4294901760
    %1266 = vmatpush1.msra.mxu0 %v1265
    %1267 = vmatprep.subr.mxu0 0.0
    %v1268 = vand.u32 %v830, 4294901760
    %1269 = vmatpush1.msra.mxu0 %v1268
    %1270 = vmatprep.subr.mxu0 0.0
    %v1271 = vand.u32 %v831, 4294901760
    %1272 = vmatpush1.msra.mxu0 %v1271
    %1273 = vmatprep.subr.mxu0 0.0
    %v1274 = vand.u32 %v832, 4294901760
    %1275 = vmatpush1.msra.mxu0 %v1274
    %1276 = vmatprep.subr.mxu0 0.0
    %v1277 = vand.u32 %v833, 4294901760
    %1278 = vmatpush1.msra.mxu0 %v1277
    %1279 = vmatprep.subr.mxu0 0.0
    %v1280 = vand.u32 %v834, 4294901760
    %1281 = vmatpush1.msra.mxu0 %v1280
    %1282 = vmatprep.subr.mxu0 0.0
    %v1283 = vand.u32 %v835, 4294901760
    %1284 = vmatpush1.msra.mxu0 %v1283
    %1285 = vmatprep.subr.mxu0 0.0
    %v1286 = vand.u32 %v836, 4294901760
    %1287 = vmatpush1.msra.mxu0 %v1286
    %1288 = vmatprep.subr.mxu0 0.0
    %v1289 = vand.u32 %v837, 4294901760
    %1290 = vmatpush1.msra.mxu0 %v1289
    %1291 = vmatprep.subr.mxu0 0.0
    %v1292 = vand.u32 %v838, 4294901760
    %1293 = vmatpush1.msra.mxu0 %v1292
    %1294 = vmatprep.subr.mxu0 0.0
    %v1295 = vand.u32 %v839, 4294901760
    %1296 = vmatpush1.msra.mxu0 %v1295
    %1297 = vmatprep.subr.mxu0 0.0
    %v1298 = vand.u32 %v840, 4294901760
    %1299 = vmatpush1.msra.mxu0 %v1298
    %1300 = vmatprep.subr.mxu0 0.0
    %v1301 = vand.u32 %v841, 4294901760
    %1302 = vmatpush1.msra.mxu0 %v1301
    %1303 = vmatprep.subr.mxu0 0.0
    %v1304 = vand.u32 %v842, 4294901760
    %1305 = vmatpush1.msra.mxu0 %v1304
    %1306 = vmatprep.subr.mxu0 0.0
    %v1307 = vand.u32 %v843, 4294901760
    %1308 = vmatpush1.msra.mxu0 %v1307
    %1309 = vmatprep.subr.mxu0 0.0
    %v1310 = vand.u32 %v844, 4294901760
    %1311 = vmatpush1.msra.mxu0 %v1310
    %1312 = vmatprep.subr.mxu0 0.0
    %1313 = vmatpush1.msra.mxu0 0.0
    %1314 = vmatprep.subr.mxu0 0.0
    %1315 = vmatpush1.msra.mxu0 0.0
    %1316 = vmatprep.subr.mxu0 0.0
    %1317 = vmatpush1.msra.mxu0 0.0
    %1318 = vmatprep.subr.mxu0 0.0
    %1319 = vmatpush1.msra.mxu0 0.0
    %1320 = vmatprep.subr.mxu0 0.0
    %1321 = vmatpush1.msra.mxu0 0.0
    %1322 = vmatprep.subr.mxu0 0.0
    %1323 = vmatpush1.msra.mxu0 0.0
    %1324 = vmatprep.subr.mxu0 0.0
    %1325 = vmatpush1.msra.mxu0 0.0
    %1326 = vmatprep.subr.mxu0 0.0
    %1327 = vmatpush1.msra.mxu0 0.0
    %1328 = vmatprep.subr.mxu0 0.0
    %1329 = vmatpush1.msra.mxu0 0.0
    %1330 = vmatprep.subr.mxu0 0.0
    %1331 = vmatpush1.msra.mxu0 0.0
    %1332 = vmatprep.subr.mxu0 0.0
    %1333 = vmatpush1.msra.mxu0 0.0
    %1334 = vmatprep.subr.mxu0 0.0
    %1335 = vmatpush1.msra.mxu0 0.0
    %1336 = vmatprep.subr.mxu0 0.0
    %1337 = vmatpush1.msra.mxu0 0.0
    %1338 = vmatprep.subr.mxu0 0.0
    %1339 = vmatpush1.msra.mxu0 0.0
    %1340 = vmatprep.subr.mxu0 0.0
    %1341 = vmatpush1.msra.mxu0 0.0
    %1342 = vmatprep.subr.mxu0 0.0
    %1343 = vmatpush1.msra.mxu0 0.0
    %1344 = vmatprep.mubr.f32.mxu0 0.0
    %v1345 = vand.u32 %v845, 4294901760
    %v1346 = vsub.f32 %v845, %v1345
    %v1347 = vand.u32 %v1346, 4294901760
    %1348 = vmatmul.mubr.f32.gmra.mrb[0].mxu0 %v1347
    %v1349 = vpop.f32.mrb[0].mxu0
    %v1350 = vadd.f32 %v1240, %v1349
    %v1351 = vpop.f32.mrb[0].mxu0
    %1352 = vmatprep.mubr.f32.mxu0 0.0
    %v1353 = vand.u32 %v846, 4294901760
    %v1354 = vsub.f32 %v846, %v1353
    %v1355 = vand.u32 %v1354, 4294901760
    %1356 = vmatmul.mubr.f32.gmra.mrb[0].mxu0 %v1355
    %v1357 = vpop.f32.mrb[0].mxu0
    %v1358 = vadd.f32 %v1247, %v1357
    %v1359 = vpop.f32.mrb[0].mxu0
    %1360 = vmatprep.mubr.f32.mxu0 0.0
    %v1361 = vand.u32 %v847, 4294901760
    %v1362 = vsub.f32 %v847, %v1361
    %v1363 = vand.u32 %v1362, 4294901760
    %1364 = vmatmul.mubr.f32.gmra.mrb[0].mxu0 %v1363
    %v1365 = vpop.f32.mrb[0].mxu0
    %v1366 = vadd.f32 %v1254, %v1365
    %v1367 = vpop.f32.mrb[0].mxu0
    %1368 = vmatprep.mubr.f32.mxu0 0.0
    %v1369 = vand.u32 %v848, 4294901760
    %v1370 = vsub.f32 %v848, %v1369
    %v1371 = vand.u32 %v1370, 4294901760
    %1372 = vmatmul.mubr.f32.gmra.mrb[0].mxu0 %v1371
    %v1373 = vpop.f32.mrb[0].mxu0
    %v1374 = vadd.f32 %v1261, %v1373
    %v1375 = vpop.f32.mrb[0].mxu0
    %1376 = vdwg.mxu0
    %1377 = vmatprep.subr.mxu0 0.0
    %v1378 = vand.u32 %v829, 4294901760
    %v1379 = vsub.f32 %v829, %v1378
    %v1380 = vand.u32 %v1379, 4294901760
    %1381 = vmatpush1.msra.mxu0 %v1380
    %1382 = vmatprep.subr.mxu0 0.0
    %v1383 = vand.u32 %v830, 4294901760
    %v1384 = vsub.f32 %v830, %v1383
    %v1385 = vand.u32 %v1384, 4294901760
    %1386 = vmatpush1.msra.mxu0 %v1385
    %1387 = vmatprep.subr.mxu0 0.0
    %v1388 = vand.u32 %v831, 4294901760
    %v1389 = vsub.f32 %v831, %v1388
    %v1390 = vand.u32 %v1389, 4294901760
    %1391 = vmatpush1.msra.mxu0 %v1390
    %1392 = vmatprep.subr.mxu0 0.0
    %v1393 = vand.u32 %v832, 4294901760
    %v1394 = vsub.f32 %v832, %v1393
    %v1395 = vand.u32 %v1394, 4294901760
    %1396 = vmatpush1.msra.mxu0 %v1395
    %1397 = vmatprep.subr.mxu0 0.0
    %v1398 = vand.u32 %v833, 4294901760
    %v1399 = vsub.f32 %v833, %v1398
    %v1400 = vand.u32 %v1399, 4294901760
    %1401 = vmatpush1.msra.mxu0 %v1400
    %1402 = vmatprep.subr.mxu0 0.0
    %v1403 = vand.u32 %v834, 4294901760
    %v1404 = vsub.f32 %v834, %v1403
    %v1405 = vand.u32 %v1404, 4294901760
    %1406 = vmatpush1.msra.mxu0 %v1405
    %1407 = vmatprep.subr.mxu0 0.0
    %v1408 = vand.u32 %v835, 4294901760
    %v1409 = vsub.f32 %v835, %v1408
    %v1410 = vand.u32 %v1409, 4294901760
    %1411 = vmatpush1.msra.mxu0 %v1410
    %1412 = vmatprep.subr.mxu0 0.0
    %v1413 = vand.u32 %v836, 4294901760
    %v1414 = vsub.f32 %v836, %v1413
    %v1415 = vand.u32 %v1414, 4294901760
    %1416 = vmatpush1.msra.mxu0 %v1415
    %1417 = vmatprep.subr.mxu0 0.0
    %v1418 = vand.u32 %v837, 4294901760
    %v1419 = vsub.f32 %v837, %v1418
    %v1420 = vand.u32 %v1419, 4294901760
    %1421 = vmatpush1.msra.mxu0 %v1420
    %1422 = vmatprep.subr.mxu0 0.0
    %v1423 = vand.u32 %v838, 4294901760
    %v1424 = vsub.f32 %v838, %v1423
    %v1425 = vand.u32 %v1424, 4294901760
    %1426 = vmatpush1.msra.mxu0 %v1425
    %1427 = vmatprep.subr.mxu0 0.0
    %v1428 = vand.u32 %v839, 4294901760
    %v1429 = vsub.f32 %v839, %v1428
    %v1430 = vand.u32 %v1429, 4294901760
    %1431 = vmatpush1.msra.mxu0 %v1430
    %1432 = vmatprep.subr.mxu0 0.0
    %v1433 = vand.u32 %v840, 4294901760
    %v1434 = vsub.f32 %v840, %v1433
    %v1435 = vand.u32 %v1434, 4294901760
    %1436 = vmatpush1.msra.mxu0 %v1435
    %1437 = vmatprep.subr.mxu0 0.0
    %v1438 = vand.u32 %v841, 4294901760
    %v1439 = vsub.f32 %v841, %v1438
    %v1440 = vand.u32 %v1439, 4294901760
    %1441 = vmatpush1.msra.mxu0 %v1440
    %1442 = vmatprep.subr.mxu0 0.0
    %v1443 = vand.u32 %v842, 4294901760
    %v1444 = vsub.f32 %v842, %v1443
    %v1445 = vand.u32 %v1444, 4294901760
    %1446 = vmatpush1.msra.mxu0 %v1445
    %1447 = vmatprep.subr.mxu0 0.0
    %v1448 = vand.u32 %v843, 4294901760
    %v1449 = vsub.f32 %v843, %v1448
    %v1450 = vand.u32 %v1449, 4294901760
    %1451 = vmatpush1.msra.mxu0 %v1450
    %1452 = vmatprep.subr.mxu0 0.0
    %v1453 = vand.u32 %v844, 4294901760
    %v1454 = vsub.f32 %v844, %v1453
    %v1455 = vand.u32 %v1454, 4294901760
    %1456 = vmatpush1.msra.mxu0 %v1455
    %1457 = vmatprep.subr.mxu0 0.0
    %1458 = vmatpush1.msra.mxu0 0.0
    %1459 = vmatprep.subr.mxu0 0.0
    %1460 = vmatpush1.msra.mxu0 0.0
    %1461 = vmatprep.subr.mxu0 0.0
    %1462 = vmatpush1.msra.mxu0 0.0
    %1463 = vmatprep.subr.mxu0 0.0
    %1464 = vmatpush1.msra.mxu0 0.0
    %1465 = vmatprep.subr.mxu0 0.0
    %1466 = vmatpush1.msra.mxu0 0.0
    %1467 = vmatprep.subr.mxu0 0.0
    %1468 = vmatpush1.msra.mxu0 0.0
    %1469 = vmatprep.subr.mxu0 0.0
    %1470 = vmatpush1.msra.mxu0 0.0
    %1471 = vmatprep.subr.mxu0 0.0
    %1472 = vmatpush1.msra.mxu0 0.0
    %1473 = vmatprep.subr.mxu0 0.0
    %1474 = vmatpush1.msra.mxu0 0.0
    %1475 = vmatprep.subr.mxu0 0.0
    %1476 = vmatpush1.msra.mxu0 0.0
    %1477 = vmatprep.subr.mxu0 0.0
    %1478 = vmatpush1.msra.mxu0 0.0
    %1479 = vmatprep.subr.mxu0 0.0
    %1480 = vmatpush1.msra.mxu0 0.0
    %1481 = vmatprep.subr.mxu0 0.0
    %1482 = vmatpush1.msra.mxu0 0.0
    %1483 = vmatprep.subr.mxu0 0.0
    %1484 = vmatpush1.msra.mxu0 0.0
    %1485 = vmatprep.subr.mxu0 0.0
    %1486 = vmatpush1.msra.mxu0 0.0
    %1487 = vmatprep.subr.mxu0 0.0
    %1488 = vmatpush1.msra.mxu0 0.0
    %1489 = vmatprep.mubr.f32.mxu0 0.0
    %v1490 = vand.u32 %v845, 4294901760
    %1491 = vmatmul.mubr.f32.gmra.mrb[0].mxu0 %v1490
    %v1492 = vpop.f32.mrb[0].mxu0
    %v1493 = vadd.f32 %v1350, %v1492
    %v1494 = vpop.f32.mrb[0].mxu0
    %1495 = vmatprep.mubr.f32.mxu0 0.0
    %v1496 = vand.u32 %v846, 4294901760
    %1497 = vmatmul.mubr.f32.gmra.mrb[0].mxu0 %v1496
    %v1498 = vpop.f32.mrb[0].mxu0
    %v1499 = vadd.f32 %v1358, %v1498
    %v1500 = vpop.f32.mrb[0].mxu0
    %1501 = vmatprep.mubr.f32.mxu0 0.0
    %v1502 = vand.u32 %v847, 4294901760
    %1503 = vmatmul.mubr.f32.gmra.mrb[0].mxu0 %v1502
    %v1504 = vpop.f32.mrb[0].mxu0
    %v1505 = vadd.f32 %v1366, %v1504
    %v1506 = vpop.f32.mrb[0].mxu0
    %1507 = vmatprep.mubr.f32.mxu0 0.0
    %v1508 = vand.u32 %v848, 4294901760
    %1509 = vmatmul.mubr.f32.gmra.mrb[0].mxu0 %v1508
    %v1510 = vpop.f32.mrb[0].mxu0
    %v1511 = vadd.f32 %v1374, %v1510
    %v1512 = vpop.f32.mrb[0].mxu0
    %1513 = vdwg.mxu0
    %1514 = vmatprep.subr.mxu0 0.0
    %v1515 = vand.u32 %v829, 4294901760
    %1516 = vmatpush1.msra.mxu0 %v1515
    %1517 = vmatprep.subr.mxu0 0.0
    %v1518 = vand.u32 %v830, 4294901760
    %1519 = vmatpush1.msra.mxu0 %v1518
    %1520 = vmatprep.subr.mxu0 0.0
    %v1521 = vand.u32 %v831, 4294901760
    %1522 = vmatpush1.msra.mxu0 %v1521
    %1523 = vmatprep.subr.mxu0 0.0
    %v1524 = vand.u32 %v832, 4294901760
    %1525 = vmatpush1.msra.mxu0 %v1524
    %1526 = vmatprep.subr.mxu0 0.0
    %v1527 = vand.u32 %v833, 4294901760
    %1528 = vmatpush1.msra.mxu0 %v1527
    %1529 = vmatprep.subr.mxu0 0.0
    %v1530 = vand.u32 %v834, 4294901760
    %1531 = vmatpush1.msra.mxu0 %v1530
    %1532 = vmatprep.subr.mxu0 0.0
    %v1533 = vand.u32 %v835, 4294901760
    %1534 = vmatpush1.msra.mxu0 %v1533
    %1535 = vmatprep.subr.mxu0 0.0
    %v1536 = vand.u32 %v836, 4294901760
    %1537 = vmatpush1.msra.mxu0 %v1536
    %1538 = vmatprep.subr.mxu0 0.0
    %v1539 = vand.u32 %v837, 4294901760
    %1540 = vmatpush1.msra.mxu0 %v1539
    %1541 = vmatprep.subr.mxu0 0.0
    %v1542 = vand.u32 %v838, 4294901760
    %1543 = vmatpush1.msra.mxu0 %v1542
    %1544 = vmatprep.subr.mxu0 0.0
    %v1545 = vand.u32 %v839, 4294901760
    %1546 = vmatpush1.msra.mxu0 %v1545
    %1547 = vmatprep.subr.mxu0 0.0
    %v1548 = vand.u32 %v840, 4294901760
    %1549 = vmatpush1.msra.mxu0 %v1548
    %1550 = vmatprep.subr.mxu0 0.0
    %v1551 = vand.u32 %v841, 4294901760
    %1552 = vmatpush1.msra.mxu0 %v1551
    %1553 = vmatprep.subr.mxu0 0.0
    %v1554 = vand.u32 %v842, 4294901760
    %1555 = vmatpush1.msra.mxu0 %v1554
    %1556 = vmatprep.subr.mxu0 0.0
    %v1557 = vand.u32 %v843, 4294901760
    %1558 = vmatpush1.msra.mxu0 %v1557
    %1559 = vmatprep.subr.mxu0 0.0
    %v1560 = vand.u32 %v844, 4294901760
    %1561 = vmatpush1.msra.mxu0 %v1560
    %1562 = vmatprep.subr.mxu0 0.0
    %1563 = vmatpush1.msra.mxu0 0.0
    %1564 = vmatprep.subr.mxu0 0.0
    %1565 = vmatpush1.msra.mxu0 0.0
    %1566 = vmatprep.subr.mxu0 0.0
    %1567 = vmatpush1.msra.mxu0 0.0
    %1568 = vmatprep.subr.mxu0 0.0
    %1569 = vmatpush1.msra.mxu0 0.0
    %1570 = vmatprep.subr.mxu0 0.0
    %1571 = vmatpush1.msra.mxu0 0.0
    %1572 = vmatprep.subr.mxu0 0.0
    %1573 = vmatpush1.msra.mxu0 0.0
    %1574 = vmatprep.subr.mxu0 0.0
    %1575 = vmatpush1.msra.mxu0 0.0
    %1576 = vmatprep.subr.mxu0 0.0
    %1577 = vmatpush1.msra.mxu0 0.0
    %1578 = vmatprep.subr.mxu0 0.0
    %1579 = vmatpush1.msra.mxu0 0.0
    %1580 = vmatprep.subr.mxu0 0.0
    %1581 = vmatpush1.msra.mxu0 0.0
    %1582 = vmatprep.subr.mxu0 0.0
    %1583 = vmatpush1.msra.mxu0 0.0
    %1584 = vmatprep.subr.mxu0 0.0
    %1585 = vmatpush1.msra.mxu0 0.0
    %1586 = vmatprep.subr.mxu0 0.0
    %1587 = vmatpush1.msra.mxu0 0.0
    %1588 = vmatprep.subr.mxu0 0.0
    %1589 = vmatpush1.msra.mxu0 0.0
    %1590 = vmatprep.subr.mxu0 0.0
    %1591 = vmatpush1.msra.mxu0 0.0
    %1592 = vmatprep.subr.mxu0 0.0
    %1593 = vmatpush1.msra.mxu0 0.0
    %1594 = vmatprep.mubr.f32.mxu0 0.0
    %v1595 = vand.u32 %v845, 4294901760
    %1596 = vmatmul.mubr.f32.gmra.mrb[0].mxu0 %v1595
    %v1597 = vpop.f32.mrb[0].mxu0
    %v1598 = vadd.f32 %v1493, %v1597
    %v1599 = vpop.f32.mrb[0].mxu0
    %1600 = vmatprep.mubr.f32.mxu0 0.0
    %v1601 = vand.u32 %v846, 4294901760
    %1602 = vmatmul.mubr.f32.gmra.mrb[0].mxu0 %v1601
    %v1603 = vpop.f32.mrb[0].mxu0
    %v1604 = vadd.f32 %v1499, %v1603
    %v1605 = vpop.f32.mrb[0].mxu0
    %1606 = vmatprep.mubr.f32.mxu0 0.0
    %v1607 = vand.u32 %v847, 4294901760
    %1608 = vmatmul.mubr.f32.gmra.mrb[0].mxu0 %v1607
    %v1609 = vpop.f32.mrb[0].mxu0
    %v1610 = vadd.f32 %v1505, %v1609
    %v1611 = vpop.f32.mrb[0].mxu0
    %1612 = vmatprep.mubr.f32.mxu0 0.0
    %v1613 = vand.u32 %v848, 4294901760
    %1614 = vmatmul.mubr.f32.gmra.mrb[0].mxu0 %v1613
    %v1615 = vpop.f32.mrb[0].mxu0
    %v1616 = vadd.f32 %v1511, %v1615
    %v1617 = vpop.f32.mrb[0].mxu0
    %1618 = vdwg.mxu0
    %v1619 = vld [vmem:[%s2] sm:$0x1]
    %v1620 = vlaneseq
    %v1621 = vshrl.u32 %v1620, 7
    %v1622 = vsub.s32 0, %v1621
    %v1623 = vrot.slane %v1619, %v1622
    %vm1624 = vcmp.eq.s32.totalorder %v65, %v1623
    %vm1625 = vcmp.eq.s32.totalorder %v66, %v1623
    %vm1626 = vcmp.eq.s32.totalorder %v67, %v1623
    %vm1627 = vcmp.eq.s32.totalorder %v68, %v1623
    %vm1628 = vcmp.eq.s32.totalorder %v69, %v1623
    %vm1629 = vcmp.eq.s32.totalorder %v70, %v1623
    %vm1630 = vcmp.eq.s32.totalorder %v71, %v1623
    %vm1631 = vcmp.eq.s32.totalorder %v72, %v1623
    %vm1632 = vcmp.eq.s32.totalorder %v785, %v1623
    %vm1633 = vcmp.eq.s32.totalorder %v786, %v1623
    %vm1634 = vcmp.eq.s32.totalorder %v787, %v1623
    %vm1635 = vcmp.eq.s32.totalorder %v788, %v1623
    %vm1636 = vcmp.eq.s32.totalorder %v789, %v1623
    %vm1637 = vcmp.eq.s32.totalorder %v790, %v1623
    %vm1638 = vcmp.eq.s32.totalorder %v791, %v1623
    %vm1639 = vcmp.eq.s32.totalorder %v792, %v1623
    %v1640 = vsel %vm1624, 1, 0
    %v1641 = vsel %vm1625, 1, 0
    %v1642 = vsel %vm1626, 1, 0
    %v1643 = vsel %vm1627, 1, 0
    %v1644 = vsel %vm1628, 1, 0
    %v1645 = vsel %vm1629, 1, 0
    %v1646 = vsel %vm1630, 1, 0
    %v1647 = vsel %vm1631, 1, 0
    %v1648 = vsel %vm1632, 1, 0
    %v1649 = vsel %vm1633, 1, 0
    %v1650 = vsel %vm1634, 1, 0
    %v1651 = vsel %vm1635, 1, 0
    %v1652 = vsel %vm1636, 1, 0
    %v1653 = vsel %vm1637, 1, 0
    %v1654 = vsel %vm1638, 1, 0
    %v1655 = vsel %vm1639, 1, 0
    %v1656 = vcvt.s32.f32 %v1640
    %v1657 = vcvt.s32.f32 %v1641
    %v1658 = vcvt.s32.f32 %v1642
    %v1659 = vcvt.s32.f32 %v1643
    %v1660 = vcvt.s32.f32 %v1644
    %v1661 = vcvt.s32.f32 %v1645
    %v1662 = vcvt.s32.f32 %v1646
    %v1663 = vcvt.s32.f32 %v1647
    %v1664 = vcvt.s32.f32 %v1648
    %v1665 = vcvt.s32.f32 %v1649
    %v1666 = vcvt.s32.f32 %v1650
    %v1667 = vcvt.s32.f32 %v1651
    %v1668 = vcvt.s32.f32 %v1652
    %v1669 = vcvt.s32.f32 %v1653
    %v1670 = vcvt.s32.f32 %v1654
    %v1671 = vcvt.s32.f32 %v1655
    %1672 = vmatprep.subr.mxu0 0.0
    %v1673 = vand.u32 %v1656, 4294901760
    %1674 = vmatpush1.msra.mxu0 %v1673
    %1675 = vmatprep.subr.mxu0 0.0
    %v1676 = vand.u32 %v1657, 4294901760
    %1677 = vmatpush1.msra.mxu0 %v1676
    %1678 = vmatprep.subr.mxu0 0.0
    %v1679 = vand.u32 %v1658, 4294901760
    %1680 = vmatpush1.msra.mxu0 %v1679
    %1681 = vmatprep.subr.mxu0 0.0
    %v1682 = vand.u32 %v1659, 4294901760
    %1683 = vmatpush1.msra.mxu0 %v1682
    %1684 = vmatprep.subr.mxu0 0.0
    %v1685 = vand.u32 %v1660, 4294901760
    %1686 = vmatpush1.msra.mxu0 %v1685
    %1687 = vmatprep.subr.mxu0 0.0
    %v1688 = vand.u32 %v1661, 4294901760
    %1689 = vmatpush1.msra.mxu0 %v1688
    %1690 = vmatprep.subr.mxu0 0.0
    %v1691 = vand.u32 %v1662, 4294901760
    %1692 = vmatpush1.msra.mxu0 %v1691
    %1693 = vmatprep.subr.mxu0 0.0
    %v1694 = vand.u32 %v1663, 4294901760
    %1695 = vmatpush1.msra.mxu0 %v1694
    %1696 = vmatprep.subr.mxu0 0.0
    %v1697 = vand.u32 %v1664, 4294901760
    %1698 = vmatpush1.msra.mxu0 %v1697
    %1699 = vmatprep.subr.mxu0 0.0
    %v1700 = vand.u32 %v1665, 4294901760
    %1701 = vmatpush1.msra.mxu0 %v1700
    %1702 = vmatprep.subr.mxu0 0.0
    %v1703 = vand.u32 %v1666, 4294901760
    %1704 = vmatpush1.msra.mxu0 %v1703
    %1705 = vmatprep.subr.mxu0 0.0
    %v1706 = vand.u32 %v1667, 4294901760
    %1707 = vmatpush1.msra.mxu0 %v1706
    %1708 = vmatprep.subr.mxu0 0.0
    %v1709 = vand.u32 %v1668, 4294901760
    %1710 = vmatpush1.msra.mxu0 %v1709
    %1711 = vmatprep.subr.mxu0 0.0
    %v1712 = vand.u32 %v1669, 4294901760
    %1713 = vmatpush1.msra.mxu0 %v1712
    %1714 = vmatprep.subr.mxu0 0.0
    %v1715 = vand.u32 %v1670, 4294901760
    %1716 = vmatpush1.msra.mxu0 %v1715
    %1717 = vmatprep.subr.mxu0 0.0
    %v1718 = vand.u32 %v1671, 4294901760
    %1719 = vmatpush1.msra.mxu0 %v1718
    %1720 = vmatprep.subr.mxu0 0.0
    %1721 = vmatpush1.msra.mxu0 0.0
    %1722 = vmatprep.subr.mxu0 0.0
    %1723 = vmatpush1.msra.mxu0 0.0
    %1724 = vmatprep.subr.mxu0 0.0
    %1725 = vmatpush1.msra.mxu0 0.0
    %1726 = vmatprep.subr.mxu0 0.0
    %1727 = vmatpush1.msra.mxu0 0.0
    %1728 = vmatprep.subr.mxu0 0.0
    %1729 = vmatpush1.msra.mxu0 0.0
    %1730 = vmatprep.subr.mxu0 0.0
    %1731 = vmatpush1.msra.mxu0 0.0
    %1732 = vmatprep.subr.mxu0 0.0
    %1733 = vmatpush1.msra.mxu0 0.0
    %1734 = vmatprep.subr.mxu0 0.0
    %1735 = vmatpush1.msra.mxu0 0.0
    %1736 = vmatprep.subr.mxu0 0.0
    %1737 = vmatpush1.msra.mxu0 0.0
    %1738 = vmatprep.subr.mxu0 0.0
    %1739 = vmatpush1.msra.mxu0 0.0
    %1740 = vmatprep.subr.mxu0 0.0
    %1741 = vmatpush1.msra.mxu0 0.0
    %1742 = vmatprep.subr.mxu0 0.0
    %1743 = vmatpush1.msra.mxu0 0.0
    %1744 = vmatprep.subr.mxu0 0.0
    %1745 = vmatpush1.msra.mxu0 0.0
    %1746 = vmatprep.subr.mxu0 0.0
    %1747 = vmatpush1.msra.mxu0 0.0
    %1748 = vmatprep.subr.mxu0 0.0
    %1749 = vmatpush1.msra.mxu0 0.0
    %1750 = vmatprep.subr.mxu0 0.0
    %1751 = vmatpush1.msra.mxu0 0.0
    %1752 = vmatprep.mubr.f32.mxu0 0.0
    %v1753 = vand.u32 %v845, 4294901760
    %v1754 = vsub.f32 %v845, %v1753
    %v1755 = vand.u32 %v1754, 4294901760
    %v1756 = vsub.f32 %v1754, %v1755
    %v1757 = vand.u32 %v1756, 4294901760
    %1758 = vmatmul.mubr.f32.gmra.mrb[0].mxu0 %v1757
    %v1759 = vpop.f32.mrb[0].mxu0
    %v1760 = vadd.f32 0.0, %v1759
    %v1761 = vpop.f32.mrb[0].mxu0
    %1762 = vmatprep.mubr.f32.mxu0 0.0
    %v1763 = vand.u32 %v846, 4294901760
    %v1764 = vsub.f32 %v846, %v1763
    %v1765 = vand.u32 %v1764, 4294901760
    %v1766 = vsub.f32 %v1764, %v1765
    %v1767 = vand.u32 %v1766, 4294901760
    %1768 = vmatmul.mubr.f32.gmra.mrb[0].mxu0 %v1767
    %v1769 = vpop.f32.mrb[0].mxu0
    %v1770 = vadd.f32 0.0, %v1769
    %v1771 = vpop.f32.mrb[0].mxu0
    %1772 = vmatprep.mubr.f32.mxu0 0.0
    %v1773 = vand.u32 %v847, 4294901760
    %v1774 = vsub.f32 %v847, %v1773
    %v1775 = vand.u32 %v1774, 4294901760
    %v1776 = vsub.f32 %v1774, %v1775
    %v1777 = vand.u32 %v1776, 4294901760
    %1778 = vmatmul.mubr.f32.gmra.mrb[0].mxu0 %v1777
    %v1779 = vpop.f32.mrb[0].mxu0
    %v1780 = vadd.f32 0.0, %v1779
    %v1781 = vpop.f32.mrb[0].mxu0
    %1782 = vmatprep.mubr.f32.mxu0 0.0
    %v1783 = vand.u32 %v848, 4294901760
    %v1784 = vsub.f32 %v848, %v1783
    %v1785 = vand.u32 %v1784, 4294901760
    %v1786 = vsub.f32 %v1784, %v1785
    %v1787 = vand.u32 %v1786, 4294901760
    %1788 = vmatmul.mubr.f32.gmra.mrb[0].mxu0 %v1787
    %v1789 = vpop.f32.mrb[0].mxu0
    %v1790 = vadd.f32 0.0, %v1789
    %v1791 = vpop.f32.mrb[0].mxu0
    %1792 = vdwg.mxu0
    %1793 = vmatprep.subr.mxu0 0.0
    %v1794 = vand.u32 %v1656, 4294901760
    %v1795 = vsub.f32 %v1656, %v1794
    %v1796 = vand.u32 %v1795, 4294901760
    %v1797 = vsub.f32 %v1795, %v1796
    %v1798 = vand.u32 %v1797, 4294901760
    %1799 = vmatpush1.msra.mxu0 %v1798
    %1800 = vmatprep.subr.mxu0 0.0
    %v1801 = vand.u32 %v1657, 4294901760
    %v1802 = vsub.f32 %v1657, %v1801
    %v1803 = vand.u32 %v1802, 4294901760
    %v1804 = vsub.f32 %v1802, %v1803
    %v1805 = vand.u32 %v1804, 4294901760
    %1806 = vmatpush1.msra.mxu0 %v1805
    %1807 = vmatprep.subr.mxu0 0.0
    %v1808 = vand.u32 %v1658, 4294901760
    %v1809 = vsub.f32 %v1658, %v1808
    %v1810 = vand.u32 %v1809, 4294901760
    %v1811 = vsub.f32 %v1809, %v1810
    %v1812 = vand.u32 %v1811, 4294901760
    %1813 = vmatpush1.msra.mxu0 %v1812
    %1814 = vmatprep.subr.mxu0 0.0
    %v1815 = vand.u32 %v1659, 4294901760
    %v1816 = vsub.f32 %v1659, %v1815
    %v1817 = vand.u32 %v1816, 4294901760
    %v1818 = vsub.f32 %v1816, %v1817
    %v1819 = vand.u32 %v1818, 4294901760
    %1820 = vmatpush1.msra.mxu0 %v1819
    %1821 = vmatprep.subr.mxu0 0.0
    %v1822 = vand.u32 %v1660, 4294901760
    %v1823 = vsub.f32 %v1660, %v1822
    %v1824 = vand.u32 %v1823, 4294901760
    %v1825 = vsub.f32 %v1823, %v1824
    %v1826 = vand.u32 %v1825, 4294901760
    %1827 = vmatpush1.msra.mxu0 %v1826
    %1828 = vmatprep.subr.mxu0 0.0
    %v1829 = vand.u32 %v1661, 4294901760
    %v1830 = vsub.f32 %v1661, %v1829
    %v1831 = vand.u32 %v1830, 4294901760
    %v1832 = vsub.f32 %v1830, %v1831
    %v1833 = vand.u32 %v1832, 4294901760
    %1834 = vmatpush1.msra.mxu0 %v1833
    %1835 = vmatprep.subr.mxu0 0.0
    %v1836 = vand.u32 %v1662, 4294901760
    %v1837 = vsub.f32 %v1662, %v1836
    %v1838 = vand.u32 %v1837, 4294901760
    %v1839 = vsub.f32 %v1837, %v1838
    %v1840 = vand.u32 %v1839, 4294901760
    %1841 = vmatpush1.msra.mxu0 %v1840
    %1842 = vmatprep.subr.mxu0 0.0
    %v1843 = vand.u32 %v1663, 4294901760
    %v1844 = vsub.f32 %v1663, %v1843
    %v1845 = vand.u32 %v1844, 4294901760
    %v1846 = vsub.f32 %v1844, %v1845
    %v1847 = vand.u32 %v1846, 4294901760
    %1848 = vmatpush1.msra.mxu0 %v1847
    %1849 = vmatprep.subr.mxu0 0.0
    %v1850 = vand.u32 %v1664, 4294901760
    %v1851 = vsub.f32 %v1664, %v1850
    %v1852 = vand.u32 %v1851, 4294901760
    %v1853 = vsub.f32 %v1851, %v1852
    %v1854 = vand.u32 %v1853, 4294901760
    %1855 = vmatpush1.msra.mxu0 %v1854
    %1856 = vmatprep.subr.mxu0 0.0
    %v1857 = vand.u32 %v1665, 4294901760
    %v1858 = vsub.f32 %v1665, %v1857
    %v1859 = vand.u32 %v1858, 4294901760
    %v1860 = vsub.f32 %v1858, %v1859
    %v1861 = vand.u32 %v1860, 4294901760
    %1862 = vmatpush1.msra.mxu0 %v1861
    %1863 = vmatprep.subr.mxu0 0.0
    %v1864 = vand.u32 %v1666, 4294901760
    %v1865 = vsub.f32 %v1666, %v1864
    %v1866 = vand.u32 %v1865, 4294901760
    %v1867 = vsub.f32 %v1865, %v1866
    %v1868 = vand.u32 %v1867, 4294901760
    %1869 = vmatpush1.msra.mxu0 %v1868
    %1870 = vmatprep.subr.mxu0 0.0
    %v1871 = vand.u32 %v1667, 4294901760
    %v1872 = vsub.f32 %v1667, %v1871
    %v1873 = vand.u32 %v1872, 4294901760
    %v1874 = vsub.f32 %v1872, %v1873
    %v1875 = vand.u32 %v1874, 4294901760
    %1876 = vmatpush1.msra.mxu0 %v1875
    %1877 = vmatprep.subr.mxu0 0.0
    %v1878 = vand.u32 %v1668, 4294901760
    %v1879 = vsub.f32 %v1668, %v1878
    %v1880 = vand.u32 %v1879, 4294901760
    %v1881 = vsub.f32 %v1879, %v1880
    %v1882 = vand.u32 %v1881, 4294901760
    %1883 = vmatpush1.msra.mxu0 %v1882
    %1884 = vmatprep.subr.mxu0 0.0
    %v1885 = vand.u32 %v1669, 4294901760
    %v1886 = vsub.f32 %v1669, %v1885
    %v1887 = vand.u32 %v1886, 4294901760
    %v1888 = vsub.f32 %v1886, %v1887
    %v1889 = vand.u32 %v1888, 4294901760
    %1890 = vmatpush1.msra.mxu0 %v1889
    %1891 = vmatprep.subr.mxu0 0.0
    %v1892 = vand.u32 %v1670, 4294901760
    %v1893 = vsub.f32 %v1670, %v1892
    %v1894 = vand.u32 %v1893, 4294901760
    %v1895 = vsub.f32 %v1893, %v1894
    %v1896 = vand.u32 %v1895, 4294901760
    %1897 = vmatpush1.msra.mxu0 %v1896
    %1898 = vmatprep.subr.mxu0 0.0
    %v1899 = vand.u32 %v1671, 4294901760
    %v1900 = vsub.f32 %v1671, %v1899
    %v1901 = vand.u32 %v1900, 4294901760
    %v1902 = vsub.f32 %v1900, %v1901
    %v1903 = vand.u32 %v1902, 4294901760
    %1904 = vmatpush1.msra.mxu0 %v1903
    %1905 = vmatprep.subr.mxu0 0.0
    %1906 = vmatpush1.msra.mxu0 0.0
    %1907 = vmatprep.subr.mxu0 0.0
    %1908 = vmatpush1.msra.mxu0 0.0
    %1909 = vmatprep.subr.mxu0 0.0
    %1910 = vmatpush1.msra.mxu0 0.0
    %1911 = vmatprep.subr.mxu0 0.0
    %1912 = vmatpush1.msra.mxu0 0.0
    %1913 = vmatprep.subr.mxu0 0.0
    %1914 = vmatpush1.msra.mxu0 0.0
    %1915 = vmatprep.subr.mxu0 0.0
    %1916 = vmatpush1.msra.mxu0 0.0
    %1917 = vmatprep.subr.mxu0 0.0
    %1918 = vmatpush1.msra.mxu0 0.0
    %1919 = vmatprep.subr.mxu0 0.0
    %1920 = vmatpush1.msra.mxu0 0.0
    %1921 = vmatprep.subr.mxu0 0.0
    %1922 = vmatpush1.msra.mxu0 0.0
    %1923 = vmatprep.subr.mxu0 0.0
    %1924 = vmatpush1.msra.mxu0 0.0
    %1925 = vmatprep.subr.mxu0 0.0
    %1926 = vmatpush1.msra.mxu0 0.0
    %1927 = vmatprep.subr.mxu0 0.0
    %1928 = vmatpush1.msra.mxu0 0.0
    %1929 = vmatprep.subr.mxu0 0.0
    %1930 = vmatpush1.msra.mxu0 0.0
    %1931 = vmatprep.subr.mxu0 0.0
    %1932 = vmatpush1.msra.mxu0 0.0
    %1933 = vmatprep.subr.mxu0 0.0
    %1934 = vmatpush1.msra.mxu0 0.0
    %1935 = vmatprep.subr.mxu0 0.0
    %1936 = vmatpush1.msra.mxu0 0.0
    %1937 = vmatprep.mubr.f32.mxu0 0.0
    %v1938 = vand.u32 %v845, 4294901760
    %1939 = vmatmul.mubr.f32.gmra.mrb[0].mxu0 %v1938
    %v1940 = vpop.f32.mrb[0].mxu0
    %v1941 = vadd.f32 %v1760, %v1940
    %v1942 = vpop.f32.mrb[0].mxu0
    %1943 = vmatprep.mubr.f32.mxu0 0.0
    %v1944 = vand.u32 %v846, 4294901760
    %1945 = vmatmul.mubr.f32.gmra.mrb[0].mxu0 %v1944
    %v1946 = vpop.f32.mrb[0].mxu0
    %v1947 = vadd.f32 %v1770, %v1946
    %v1948 = vpop.f32.mrb[0].mxu0
    %1949 = vmatprep.mubr.f32.mxu0 0.0
    %v1950 = vand.u32 %v847, 4294901760
    %1951 = vmatmul.mubr.f32.gmra.mrb[0].mxu0 %v1950
    %v1952 = vpop.f32.mrb[0].mxu0
    %v1953 = vadd.f32 %v1780, %v1952
    %v1954 = vpop.f32.mrb[0].mxu0
    %1955 = vmatprep.mubr.f32.mxu0 0.0
    %v1956 = vand.u32 %v848, 4294901760
    %1957 = vmatmul.mubr.f32.gmra.mrb[0].mxu0 %v1956
    %v1958 = vpop.f32.mrb[0].mxu0
    %v1959 = vadd.f32 %v1790, %v1958
    %v1960 = vpop.f32.mrb[0].mxu0
    %1961 = vdwg.mxu0
    %1962 = vmatprep.subr.mxu0 0.0
    %v1963 = vand.u32 %v1656, 4294901760
    %v1964 = vsub.f32 %v1656, %v1963
    %1965 = vmatpush1.msra.mxu0 %v1964
    %1966 = vmatprep.subr.mxu0 0.0
    %v1967 = vand.u32 %v1657, 4294901760
    %v1968 = vsub.f32 %v1657, %v1967
    %1969 = vmatpush1.msra.mxu0 %v1968
    %1970 = vmatprep.subr.mxu0 0.0
    %v1971 = vand.u32 %v1658, 4294901760
    %v1972 = vsub.f32 %v1658, %v1971
    %1973 = vmatpush1.msra.mxu0 %v1972
    %1974 = vmatprep.subr.mxu0 0.0
    %v1975 = vand.u32 %v1659, 4294901760
    %v1976 = vsub.f32 %v1659, %v1975
    %1977 = vmatpush1.msra.mxu0 %v1976
    %1978 = vmatprep.subr.mxu0 0.0
    %v1979 = vand.u32 %v1660, 4294901760
    %v1980 = vsub.f32 %v1660, %v1979
    %1981 = vmatpush1.msra.mxu0 %v1980
    %1982 = vmatprep.subr.mxu0 0.0
    %v1983 = vand.u32 %v1661, 4294901760
    %v1984 = vsub.f32 %v1661, %v1983
    %1985 = vmatpush1.msra.mxu0 %v1984
    %1986 = vmatprep.subr.mxu0 0.0
    %v1987 = vand.u32 %v1662, 4294901760
    %v1988 = vsub.f32 %v1662, %v1987
    %1989 = vmatpush1.msra.mxu0 %v1988
    %1990 = vmatprep.subr.mxu0 0.0
    %v1991 = vand.u32 %v1663, 4294901760
    %v1992 = vsub.f32 %v1663, %v1991
    %1993 = vmatpush1.msra.mxu0 %v1992
    %1994 = vmatprep.subr.mxu0 0.0
    %v1995 = vand.u32 %v1664, 4294901760
    %v1996 = vsub.f32 %v1664, %v1995
    %1997 = vmatpush1.msra.mxu0 %v1996
    %1998 = vmatprep.subr.mxu0 0.0
    %v1999 = vand.u32 %v1665, 4294901760
    %v2000 = vsub.f32 %v1665, %v1999
    %2001 = vmatpush1.msra.mxu0 %v2000
    %2002 = vmatprep.subr.mxu0 0.0
    %v2003 = vand.u32 %v1666, 4294901760
    %v2004 = vsub.f32 %v1666, %v2003
    %2005 = vmatpush1.msra.mxu0 %v2004
    %2006 = vmatprep.subr.mxu0 0.0
    %v2007 = vand.u32 %v1667, 4294901760
    %v2008 = vsub.f32 %v1667, %v2007
    %2009 = vmatpush1.msra.mxu0 %v2008
    %2010 = vmatprep.subr.mxu0 0.0
    %v2011 = vand.u32 %v1668, 4294901760
    %v2012 = vsub.f32 %v1668, %v2011
    %2013 = vmatpush1.msra.mxu0 %v2012
    %2014 = vmatprep.subr.mxu0 0.0
    %v2015 = vand.u32 %v1669, 4294901760
    %v2016 = vsub.f32 %v1669, %v2015
    %2017 = vmatpush1.msra.mxu0 %v2016
    %2018 = vmatprep.subr.mxu0 0.0
    %v2019 = vand.u32 %v1670, 4294901760
    %v2020 = vsub.f32 %v1670, %v2019
    %2021 = vmatpush1.msra.mxu0 %v2020
    %2022 = vmatprep.subr.mxu0 0.0
    %v2023 = vand.u32 %v1671, 4294901760
    %v2024 = vsub.f32 %v1671, %v2023
    %2025 = vmatpush1.msra.mxu0 %v2024
    %2026 = vmatprep.subr.mxu0 0.0
    %2027 = vmatpush1.msra.mxu0 0.0
    %2028 = vmatprep.subr.mxu0 0.0
    %2029 = vmatpush1.msra.mxu0 0.0
    %2030 = vmatprep.subr.mxu0 0.0
    %2031 = vmatpush1.msra.mxu0 0.0
    %2032 = vmatprep.subr.mxu0 0.0
    %2033 = vmatpush1.msra.mxu0 0.0
    %2034 = vmatprep.subr.mxu0 0.0
    %2035 = vmatpush1.msra.mxu0 0.0
    %2036 = vmatprep.subr.mxu0 0.0
    %2037 = vmatpush1.msra.mxu0 0.0
    %2038 = vmatprep.subr.mxu0 0.0
    %2039 = vmatpush1.msra.mxu0 0.0
    %2040 = vmatprep.subr.mxu0 0.0
    %2041 = vmatpush1.msra.mxu0 0.0
    %2042 = vmatprep.subr.mxu0 0.0
    %2043 = vmatpush1.msra.mxu0 0.0
    %2044 = vmatprep.subr.mxu0 0.0
    %2045 = vmatpush1.msra.mxu0 0.0
    %2046 = vmatprep.subr.mxu0 0.0
    %2047 = vmatpush1.msra.mxu0 0.0
    %2048 = vmatprep.subr.mxu0 0.0
    %2049 = vmatpush1.msra.mxu0 0.0
    %2050 = vmatprep.subr.mxu0 0.0
    %2051 = vmatpush1.msra.mxu0 0.0
    %2052 = vmatprep.subr.mxu0 0.0
    %2053 = vmatpush1.msra.mxu0 0.0
    %2054 = vmatprep.subr.mxu0 0.0
    %2055 = vmatpush1.msra.mxu0 0.0
    %2056 = vmatprep.subr.mxu0 0.0
    %2057 = vmatpush1.msra.mxu0 0.0
    %2058 = vmatprep.mubr.f32.mxu0 0.0
    %v2059 = vand.u32 %v845, 4294901760
    %v2060 = vsub.f32 %v845, %v2059
    %2061 = vmatmul.mubr.f32.gmra.mrb[0].mxu0 %v2060
    %v2062 = vpop.f32.mrb[0].mxu0
    %v2063 = vadd.f32 %v1941, %v2062
    %v2064 = vpop.f32.mrb[0].mxu0
    %2065 = vmatprep.mubr.f32.mxu0 0.0
    %v2066 = vand.u32 %v846, 4294901760
    %v2067 = vsub.f32 %v846, %v2066
    %2068 = vmatmul.mubr.f32.gmra.mrb[0].mxu0 %v2067
    %v2069 = vpop.f32.mrb[0].mxu0
    %v2070 = vadd.f32 %v1947, %v2069
    %v2071 = vpop.f32.mrb[0].mxu0
    %2072 = vmatprep.mubr.f32.mxu0 0.0
    %v2073 = vand.u32 %v847, 4294901760
    %v2074 = vsub.f32 %v847, %v2073
    %2075 = vmatmul.mubr.f32.gmra.mrb[0].mxu0 %v2074
    %v2076 = vpop.f32.mrb[0].mxu0
    %v2077 = vadd.f32 %v1953, %v2076
    %v2078 = vpop.f32.mrb[0].mxu0
    %2079 = vmatprep.mubr.f32.mxu0 0.0
    %v2080 = vand.u32 %v848, 4294901760
    %v2081 = vsub.f32 %v848, %v2080
    %2082 = vmatmul.mubr.f32.gmra.mrb[0].mxu0 %v2081
    %v2083 = vpop.f32.mrb[0].mxu0
    %v2084 = vadd.f32 %v1959, %v2083
    %v2085 = vpop.f32.mrb[0].mxu0
    %2086 = vdwg.mxu0
    %2087 = vmatprep.subr.mxu0 0.0
    %v2088 = vand.u32 %v1656, 4294901760
    %2089 = vmatpush1.msra.mxu0 %v2088
    %2090 = vmatprep.subr.mxu0 0.0
    %v2091 = vand.u32 %v1657, 4294901760
    %2092 = vmatpush1.msra.mxu0 %v2091
    %2093 = vmatprep.subr.mxu0 0.0
    %v2094 = vand.u32 %v1658, 4294901760
    %2095 = vmatpush1.msra.mxu0 %v2094
    %2096 = vmatprep.subr.mxu0 0.0
    %v2097 = vand.u32 %v1659, 4294901760
    %2098 = vmatpush1.msra.mxu0 %v2097
    %2099 = vmatprep.subr.mxu0 0.0
    %v2100 = vand.u32 %v1660, 4294901760
    %2101 = vmatpush1.msra.mxu0 %v2100
    %2102 = vmatprep.subr.mxu0 0.0
    %v2103 = vand.u32 %v1661, 4294901760
    %2104 = vmatpush1.msra.mxu0 %v2103
    %2105 = vmatprep.subr.mxu0 0.0
    %v2106 = vand.u32 %v1662, 4294901760
    %2107 = vmatpush1.msra.mxu0 %v2106
    %2108 = vmatprep.subr.mxu0 0.0
    %v2109 = vand.u32 %v1663, 4294901760
    %2110 = vmatpush1.msra.mxu0 %v2109
    %2111 = vmatprep.subr.mxu0 0.0
    %v2112 = vand.u32 %v1664, 4294901760
    %2113 = vmatpush1.msra.mxu0 %v2112
    %2114 = vmatprep.subr.mxu0 0.0
    %v2115 = vand.u32 %v1665, 4294901760
    %2116 = vmatpush1.msra.mxu0 %v2115
    %2117 = vmatprep.subr.mxu0 0.0
    %v2118 = vand.u32 %v1666, 4294901760
    %2119 = vmatpush1.msra.mxu0 %v2118
    %2120 = vmatprep.subr.mxu0 0.0
    %v2121 = vand.u32 %v1667, 4294901760
    %2122 = vmatpush1.msra.mxu0 %v2121
    %2123 = vmatprep.subr.mxu0 0.0
    %v2124 = vand.u32 %v1668, 4294901760
    %2125 = vmatpush1.msra.mxu0 %v2124
    %2126 = vmatprep.subr.mxu0 0.0
    %v2127 = vand.u32 %v1669, 4294901760
    %2128 = vmatpush1.msra.mxu0 %v2127
    %2129 = vmatprep.subr.mxu0 0.0
    %v2130 = vand.u32 %v1670, 4294901760
    %2131 = vmatpush1.msra.mxu0 %v2130
    %2132 = vmatprep.subr.mxu0 0.0
    %v2133 = vand.u32 %v1671, 4294901760
    %2134 = vmatpush1.msra.mxu0 %v2133
    %2135 = vmatprep.subr.mxu0 0.0
    %2136 = vmatpush1.msra.mxu0 0.0
    %2137 = vmatprep.subr.mxu0 0.0
    %2138 = vmatpush1.msra.mxu0 0.0
    %2139 = vmatprep.subr.mxu0 0.0
    %2140 = vmatpush1.msra.mxu0 0.0
    %2141 = vmatprep.subr.mxu0 0.0
    %2142 = vmatpush1.msra.mxu0 0.0
    %2143 = vmatprep.subr.mxu0 0.0
    %2144 = vmatpush1.msra.mxu0 0.0
    %2145 = vmatprep.subr.mxu0 0.0
    %2146 = vmatpush1.msra.mxu0 0.0
    %2147 = vmatprep.subr.mxu0 0.0
    %2148 = vmatpush1.msra.mxu0 0.0
    %2149 = vmatprep.subr.mxu0 0.0
    %2150 = vmatpush1.msra.mxu0 0.0
    %2151 = vmatprep.subr.mxu0 0.0
    %2152 = vmatpush1.msra.mxu0 0.0
    %2153 = vmatprep.subr.mxu0 0.0
    %2154 = vmatpush1.msra.mxu0 0.0
    %2155 = vmatprep.subr.mxu0 0.0
    %2156 = vmatpush1.msra.mxu0 0.0
    %2157 = vmatprep.subr.mxu0 0.0
    %2158 = vmatpush1.msra.mxu0 0.0
    %2159 = vmatprep.subr.mxu0 0.0
    %2160 = vmatpush1.msra.mxu0 0.0
    %2161 = vmatprep.subr.mxu0 0.0
    %2162 = vmatpush1.msra.mxu0 0.0
    %2163 = vmatprep.subr.mxu0 0.0
    %2164 = vmatpush1.msra.mxu0 0.0
    %2165 = vmatprep.subr.mxu0 0.0
    %2166 = vmatpush1.msra.mxu0 0.0
    %2167 = vmatprep.mubr.f32.mxu0 0.0
    %v2168 = vand.u32 %v845, 4294901760
    %v2169 = vsub.f32 %v845, %v2168
    %v2170 = vand.u32 %v2169, 4294901760
    %2171 = vmatmul.mubr.f32.gmra.mrb[0].mxu0 %v2170
    %v2172 = vpop.f32.mrb[0].mxu0
    %v2173 = vadd.f32 %v2063, %v2172
    %v2174 = vpop.f32.mrb[0].mxu0
    %2175 = vmatprep.mubr.f32.mxu0 0.0
    %v2176 = vand.u32 %v846, 4294901760
    %v2177 = vsub.f32 %v846, %v2176
    %v2178 = vand.u32 %v2177, 4294901760
    %2179 = vmatmul.mubr.f32.gmra.mrb[0].mxu0 %v2178
    %v2180 = vpop.f32.mrb[0].mxu0
    %v2181 = vadd.f32 %v2070, %v2180
    %v2182 = vpop.f32.mrb[0].mxu0
    %2183 = vmatprep.mubr.f32.mxu0 0.0
    %v2184 = vand.u32 %v847, 4294901760
    %v2185 = vsub.f32 %v847, %v2184
    %v2186 = vand.u32 %v2185, 4294901760
    %2187 = vmatmul.mubr.f32.gmra.mrb[0].mxu0 %v2186
    %v2188 = vpop.f32.mrb[0].mxu0
    %v2189 = vadd.f32 %v2077, %v2188
    %v2190 = vpop.f32.mrb[0].mxu0
    %2191 = vmatprep.mubr.f32.mxu0 0.0
    %v2192 = vand.u32 %v848, 4294901760
    %v2193 = vsub.f32 %v848, %v2192
    %v2194 = vand.u32 %v2193, 4294901760
    %2195 = vmatmul.mubr.f32.gmra.mrb[0].mxu0 %v2194
    %v2196 = vpop.f32.mrb[0].mxu0
    %v2197 = vadd.f32 %v2084, %v2196
    %v2198 = vpop.f32.mrb[0].mxu0
    %2199 = vdwg.mxu0
    %2200 = vmatprep.subr.mxu0 0.0
    %v2201 = vand.u32 %v1656, 4294901760
    %v2202 = vsub.f32 %v1656, %v2201
    %v2203 = vand.u32 %v2202, 4294901760
    %2204 = vmatpush1.msra.mxu0 %v2203
    %2205 = vmatprep.subr.mxu0 0.0
    %v2206 = vand.u32 %v1657, 4294901760
    %v2207 = vsub.f32 %v1657, %v2206
    %v2208 = vand.u32 %v2207, 4294901760
    %2209 = vmatpush1.msra.mxu0 %v2208
    %2210 = vmatprep.subr.mxu0 0.0
    %v2211 = vand.u32 %v1658, 4294901760
    %v2212 = vsub.f32 %v1658, %v2211
    %v2213 = vand.u32 %v2212, 4294901760
    %2214 = vmatpush1.msra.mxu0 %v2213
    %2215 = vmatprep.subr.mxu0 0.0
    %v2216 = vand.u32 %v1659, 4294901760
    %v2217 = vsub.f32 %v1659, %v2216
    %v2218 = vand.u32 %v2217, 4294901760
    %2219 = vmatpush1.msra.mxu0 %v2218
    %2220 = vmatprep.subr.mxu0 0.0
    %v2221 = vand.u32 %v1660, 4294901760
    %v2222 = vsub.f32 %v1660, %v2221
    %v2223 = vand.u32 %v2222, 4294901760
    %2224 = vmatpush1.msra.mxu0 %v2223
    %2225 = vmatprep.subr.mxu0 0.0
    %v2226 = vand.u32 %v1661, 4294901760
    %v2227 = vsub.f32 %v1661, %v2226
    %v2228 = vand.u32 %v2227, 4294901760
    %2229 = vmatpush1.msra.mxu0 %v2228
    %2230 = vmatprep.subr.mxu0 0.0
    %v2231 = vand.u32 %v1662, 4294901760
    %v2232 = vsub.f32 %v1662, %v2231
    %v2233 = vand.u32 %v2232, 4294901760
    %2234 = vmatpush1.msra.mxu0 %v2233
    %2235 = vmatprep.subr.mxu0 0.0
    %v2236 = vand.u32 %v1663, 4294901760
    %v2237 = vsub.f32 %v1663, %v2236
    %v2238 = vand.u32 %v2237, 4294901760
    %2239 = vmatpush1.msra.mxu0 %v2238
    %2240 = vmatprep.subr.mxu0 0.0
    %v2241 = vand.u32 %v1664, 4294901760
    %v2242 = vsub.f32 %v1664, %v2241
    %v2243 = vand.u32 %v2242, 4294901760
    %2244 = vmatpush1.msra.mxu0 %v2243
    %2245 = vmatprep.subr.mxu0 0.0
    %v2246 = vand.u32 %v1665, 4294901760
    %v2247 = vsub.f32 %v1665, %v2246
    %v2248 = vand.u32 %v2247, 4294901760
    %2249 = vmatpush1.msra.mxu0 %v2248
    %2250 = vmatprep.subr.mxu0 0.0
    %v2251 = vand.u32 %v1666, 4294901760
    %v2252 = vsub.f32 %v1666, %v2251
    %v2253 = vand.u32 %v2252, 4294901760
    %2254 = vmatpush1.msra.mxu0 %v2253
    %2255 = vmatprep.subr.mxu0 0.0
    %v2256 = vand.u32 %v1667, 4294901760
    %v2257 = vsub.f32 %v1667, %v2256
    %v2258 = vand.u32 %v2257, 4294901760
    %2259 = vmatpush1.msra.mxu0 %v2258
    %2260 = vmatprep.subr.mxu0 0.0
    %v2261 = vand.u32 %v1668, 4294901760
    %v2262 = vsub.f32 %v1668, %v2261
    %v2263 = vand.u32 %v2262, 4294901760
    %2264 = vmatpush1.msra.mxu0 %v2263
    %2265 = vmatprep.subr.mxu0 0.0
    %v2266 = vand.u32 %v1669, 4294901760
    %v2267 = vsub.f32 %v1669, %v2266
    %v2268 = vand.u32 %v2267, 4294901760
    %2269 = vmatpush1.msra.mxu0 %v2268
    %2270 = vmatprep.subr.mxu0 0.0
    %v2271 = vand.u32 %v1670, 4294901760
    %v2272 = vsub.f32 %v1670, %v2271
    %v2273 = vand.u32 %v2272, 4294901760
    %2274 = vmatpush1.msra.mxu0 %v2273
    %2275 = vmatprep.subr.mxu0 0.0
    %v2276 = vand.u32 %v1671, 4294901760
    %v2277 = vsub.f32 %v1671, %v2276
    %v2278 = vand.u32 %v2277, 4294901760
    %2279 = vmatpush1.msra.mxu0 %v2278
    %2280 = vmatprep.subr.mxu0 0.0
    %2281 = vmatpush1.msra.mxu0 0.0
    %2282 = vmatprep.subr.mxu0 0.0
    %2283 = vmatpush1.msra.mxu0 0.0
    %2284 = vmatprep.subr.mxu0 0.0
    %2285 = vmatpush1.msra.mxu0 0.0
    %2286 = vmatprep.subr.mxu0 0.0
    %2287 = vmatpush1.msra.mxu0 0.0
    %2288 = vmatprep.subr.mxu0 0.0
    %2289 = vmatpush1.msra.mxu0 0.0
    %2290 = vmatprep.subr.mxu0 0.0
    %2291 = vmatpush1.msra.mxu0 0.0
    %2292 = vmatprep.subr.mxu0 0.0
    %2293 = vmatpush1.msra.mxu0 0.0
    %2294 = vmatprep.subr.mxu0 0.0
    %2295 = vmatpush1.msra.mxu0 0.0
    %2296 = vmatprep.subr.mxu0 0.0
    %2297 = vmatpush1.msra.mxu0 0.0
    %2298 = vmatprep.subr.mxu0 0.0
    %2299 = vmatpush1.msra.mxu0 0.0
    %2300 = vmatprep.subr.mxu0 0.0
    %2301 = vmatpush1.msra.mxu0 0.0
    %2302 = vmatprep.subr.mxu0 0.0
    %2303 = vmatpush1.msra.mxu0 0.0
    %2304 = vmatprep.subr.mxu0 0.0
    %2305 = vmatpush1.msra.mxu0 0.0
    %2306 = vmatprep.subr.mxu0 0.0
    %2307 = vmatpush1.msra.mxu0 0.0
    %2308 = vmatprep.subr.mxu0 0.0
    %2309 = vmatpush1.msra.mxu0 0.0
    %2310 = vmatprep.subr.mxu0 0.0
    %2311 = vmatpush1.msra.mxu0 0.0
    %2312 = vmatprep.mubr.f32.mxu0 0.0
    %v2313 = vand.u32 %v845, 4294901760
    %2314 = vmatmul.mubr.f32.gmra.mrb[0].mxu0 %v2313
    %v2315 = vpop.f32.mrb[0].mxu0
    %v2316 = vadd.f32 %v2173, %v2315
    %v2317 = vpop.f32.mrb[0].mxu0
    %2318 = vmatprep.mubr.f32.mxu0 0.0
    %v2319 = vand.u32 %v846, 4294901760
    %2320 = vmatmul.mubr.f32.gmra.mrb[0].mxu0 %v2319
    %v2321 = vpop.f32.mrb[0].mxu0
    %v2322 = vadd.f32 %v2181, %v2321
    %v2323 = vpop.f32.mrb[0].mxu0
    %2324 = vmatprep.mubr.f32.mxu0 0.0
    %v2325 = vand.u32 %v847, 4294901760
    %2326 = vmatmul.mubr.f32.gmra.mrb[0].mxu0 %v2325
    %v2327 = vpop.f32.mrb[0].mxu0
    %v2328 = vadd.f32 %v2189, %v2327
    %v2329 = vpop.f32.mrb[0].mxu0
    %2330 = vmatprep.mubr.f32.mxu0 0.0
    %v2331 = vand.u32 %v848, 4294901760
    %2332 = vmatmul.mubr.f32.gmra.mrb[0].mxu0 %v2331
    %v2333 = vpop.f32.mrb[0].mxu0
    %v2334 = vadd.f32 %v2197, %v2333
    %v2335 = vpop.f32.mrb[0].mxu0
    %2336 = vdwg.mxu0
    %2337 = vmatprep.subr.mxu0 0.0
    %v2338 = vand.u32 %v1656, 4294901760
    %2339 = vmatpush1.msra.mxu0 %v2338
    %2340 = vmatprep.subr.mxu0 0.0
    %v2341 = vand.u32 %v1657, 4294901760
    %2342 = vmatpush1.msra.mxu0 %v2341
    %2343 = vmatprep.subr.mxu0 0.0
    %v2344 = vand.u32 %v1658, 4294901760
    %2345 = vmatpush1.msra.mxu0 %v2344
    %2346 = vmatprep.subr.mxu0 0.0
    %v2347 = vand.u32 %v1659, 4294901760
    %2348 = vmatpush1.msra.mxu0 %v2347
    %2349 = vmatprep.subr.mxu0 0.0
    %v2350 = vand.u32 %v1660, 4294901760
    %2351 = vmatpush1.msra.mxu0 %v2350
    %2352 = vmatprep.subr.mxu0 0.0
    %v2353 = vand.u32 %v1661, 4294901760
    %2354 = vmatpush1.msra.mxu0 %v2353
    %2355 = vmatprep.subr.mxu0 0.0
    %v2356 = vand.u32 %v1662, 4294901760
    %2357 = vmatpush1.msra.mxu0 %v2356
    %2358 = vmatprep.subr.mxu0 0.0
    %v2359 = vand.u32 %v1663, 4294901760
    %2360 = vmatpush1.msra.mxu0 %v2359
    %2361 = vmatprep.subr.mxu0 0.0
    %v2362 = vand.u32 %v1664, 4294901760
    %2363 = vmatpush1.msra.mxu0 %v2362
    %2364 = vmatprep.subr.mxu0 0.0
    %v2365 = vand.u32 %v1665, 4294901760
    %2366 = vmatpush1.msra.mxu0 %v2365
    %2367 = vmatprep.subr.mxu0 0.0
    %v2368 = vand.u32 %v1666, 4294901760
    %2369 = vmatpush1.msra.mxu0 %v2368
    %2370 = vmatprep.subr.mxu0 0.0
    %v2371 = vand.u32 %v1667, 4294901760
    %2372 = vmatpush1.msra.mxu0 %v2371
    %2373 = vmatprep.subr.mxu0 0.0
    %v2374 = vand.u32 %v1668, 4294901760
    %2375 = vmatpush1.msra.mxu0 %v2374
    %2376 = vmatprep.subr.mxu0 0.0
    %v2377 = vand.u32 %v1669, 4294901760
    %2378 = vmatpush1.msra.mxu0 %v2377
    %2379 = vmatprep.subr.mxu0 0.0
    %v2380 = vand.u32 %v1670, 4294901760
    %2381 = vmatpush1.msra.mxu0 %v2380
    %2382 = vmatprep.subr.mxu0 0.0
    %v2383 = vand.u32 %v1671, 4294901760
    %2384 = vmatpush1.msra.mxu0 %v2383
    %2385 = vmatprep.subr.mxu0 0.0
    %2386 = vmatpush1.msra.mxu0 0.0
    %2387 = vmatprep.subr.mxu0 0.0
    %2388 = vmatpush1.msra.mxu0 0.0
    %2389 = vmatprep.subr.mxu0 0.0
    %2390 = vmatpush1.msra.mxu0 0.0
    %2391 = vmatprep.subr.mxu0 0.0
    %2392 = vmatpush1.msra.mxu0 0.0
    %2393 = vmatprep.subr.mxu0 0.0
    %2394 = vmatpush1.msra.mxu0 0.0
    %2395 = vmatprep.subr.mxu0 0.0
    %2396 = vmatpush1.msra.mxu0 0.0
    %2397 = vmatprep.subr.mxu0 0.0
    %2398 = vmatpush1.msra.mxu0 0.0
    %2399 = vmatprep.subr.mxu0 0.0
    %2400 = vmatpush1.msra.mxu0 0.0
    %2401 = vmatprep.subr.mxu0 0.0
    %2402 = vmatpush1.msra.mxu0 0.0
    %2403 = vmatprep.subr.mxu0 0.0
    %2404 = vmatpush1.msra.mxu0 0.0
    %2405 = vmatprep.subr.mxu0 0.0
    %2406 = vmatpush1.msra.mxu0 0.0
    %2407 = vmatprep.subr.mxu0 0.0
    %2408 = vmatpush1.msra.mxu0 0.0
    %2409 = vmatprep.subr.mxu0 0.0
    %2410 = vmatpush1.msra.mxu0 0.0
    %2411 = vmatprep.subr.mxu0 0.0
    %2412 = vmatpush1.msra.mxu0 0.0
    %2413 = vmatprep.subr.mxu0 0.0
    %2414 = vmatpush1.msra.mxu0 0.0
    %2415 = vmatprep.subr.mxu0 0.0
    %2416 = vmatpush1.msra.mxu0 0.0
    %2417 = vmatprep.mubr.f32.mxu0 0.0
    %v2418 = vand.u32 %v845, 4294901760
    %2419 = vmatmul.mubr.f32.gmra.mrb[0].mxu0 %v2418
    %v2420 = vpop.f32.mrb[0].mxu0
    %v2421 = vadd.f32 %v2316, %v2420
    %v2422 = vpop.f32.mrb[0].mxu0
    %2423 = vmatprep.mubr.f32.mxu0 0.0
    %v2424 = vand.u32 %v846, 4294901760
    %2425 = vmatmul.mubr.f32.gmra.mrb[0].mxu0 %v2424
    %v2426 = vpop.f32.mrb[0].mxu0
    %v2427 = vadd.f32 %v2322, %v2426
    %v2428 = vpop.f32.mrb[0].mxu0
    %2429 = vmatprep.mubr.f32.mxu0 0.0
    %v2430 = vand.u32 %v847, 4294901760
    %2431 = vmatmul.mubr.f32.gmra.mrb[0].mxu0 %v2430
    %v2432 = vpop.f32.mrb[0].mxu0
    %v2433 = vadd.f32 %v2328, %v2432
    %v2434 = vpop.f32.mrb[0].mxu0
    %2435 = vmatprep.mubr.f32.mxu0 0.0
    %v2436 = vand.u32 %v848, 4294901760
    %2437 = vmatmul.mubr.f32.gmra.mrb[0].mxu0 %v2436
    %v2438 = vpop.f32.mrb[0].mxu0
    %v2439 = vadd.f32 %v2334, %v2438
    %v2440 = vpop.f32.mrb[0].mxu0
    %2441 = vdwg.mxu0
    %v2442 = vmul.f32 %v763, %v1598
    %v2443 = vmul.f32 %v769, %v1604
    %v2444 = vmul.f32 %v775, %v1610
    %v2445 = vmul.f32 %v781, %v1616
    %v2446 = vadd.f32 %v2442, %v2443
    %v2447 = vadd.f32 %v2446, %v2444
    %v2448 = vadd.f32 %v2447, %v2445
    %v2449 = vrot.slane %v2448, 4
    %v2450 = vadd.f32 %v2448, %v2449
    %v2451 = vrot.slane %v2450, 2
    %v2452 = vadd.f32 %v2450, %v2451
    %v2453 = vrot.slane %v2452, 1
    %v2454 = vadd.f32 %v2452, %v2453
    %2455 = vst [vmem:[#allocation8] sm:$0x1] %v2454
    %v2456 = vmul.f32 %v763, %v2421
    %v2457 = vmul.f32 %v769, %v2427
    %v2458 = vmul.f32 %v775, %v2433
    %v2459 = vmul.f32 %v781, %v2439
    %v2460 = vadd.f32 %v2456, %v2457
    %v2461 = vadd.f32 %v2460, %v2458
    %v2462 = vadd.f32 %v2461, %v2459
    %v2463 = vrot.slane %v2462, 4
    %v2464 = vadd.f32 %v2462, %v2463
    %v2465 = vrot.slane %v2464, 2
    %v2466 = vadd.f32 %v2464, %v2465
    %v2467 = vrot.slane %v2466, 1
    %v2468 = vadd.f32 %v2466, %v2467
    %2469 = vst [vmem:[#allocation9] sm:$0x1] %v2468
    // Predicated region
    $region34: #{tpu_custom_call.1} parent=1 // pred_check
      _
    $region35: #{tpu_custom_call.1} parent=1 // pred_check_branch
      %2471 = sbr.rel (0) target = $region37
    $region36: #{tpu_custom_call.1} parent=1 // pred_region
      %s2473 = ssub.s32 16, 16
      %2474 = vsyncadd [#allocation4], %s2473
      %s2476 = sshll.u32 [#allocation8], 4
      %s2477 = int_to_ptr.vmem [resolvable:$true] %s2476
      %2479 = dma.vmem_to_hbm [thread:$0]  %s2477, 16, %s5, [#allocation4]
    $region37: #{tpu_custom_call.1} parent=1 // pred_fallthru
      _
    // Predicated region
    $region38: #{tpu_custom_call.1} parent=1 // pred_check
      _
    $region39: #{tpu_custom_call.1} parent=1 // pred_check_branch
      %2481 = sbr.rel (0) target = $region41
    $region40: #{tpu_custom_call.1} parent=1 // pred_region
      %s2483 = ssub.s32 16, 16
      %2484 = vsyncadd [#allocation10], %s2483
      %s2486 = sshll.u32 [#allocation9], 4
      %s2487 = int_to_ptr.vmem [resolvable:$true] %s2486
      %2489 = dma.vmem_to_hbm [thread:$0]  %s2487, 16, %s6, [#allocation10]
    $region41: #{tpu_custom_call.1} parent=1 // pred_fallthru
      _
    // Predicated region
    $region42: #{tpu_custom_call.1} parent=1 // pred_check
      _
    $region43: #{tpu_custom_call.1} parent=1 // pred_check_branch
      %2491 = sbr.rel (0) target = $region45
    $region44: #{tpu_custom_call.1} parent=1 // pred_region
      %2492 = dma.done [#allocation4], 16
    $region45: #{tpu_custom_call.1} parent=1 // pred_fallthru
      _
    // Predicated region
    $region46: #{tpu_custom_call.1} parent=1 // pred_check
      _
    $region47: #{tpu_custom_call.1} parent=1 // pred_check_branch
      %2494 = sbr.rel (0) target = $region49
    $region48: #{tpu_custom_call.1} parent=1 // pred_region
      %2495 = dma.done [#allocation10], 16
    $region49: #{tpu_custom_call.1} parent=1 // pred_fallthru
      _
    %2496 = vsyncpa [#allocation3], 1
    %2497 = vsyncpa [#allocation6], 1
    %2498 = vsyncpa [#allocation4], 1
    %2499 = vsyncpa [#allocation10], 1

</llo_original>
